<compile_context>
chip_gen: v7x
topology: tpu7x:2x2x1
jax: 0.10.0
libtpu: 0.0.40
codegen_flags: <defaults>
</compile_context>

<pallas_src>
import functools

import jax
import jax.numpy as jnp
from jax import lax
from jax.experimental import pallas as pl
from jax.experimental.pallas import tpu as pltpu

# True layer dims of the PyTorch module: 784 -> 64 -> 64 -> 64 -> 64 -> 64 -> 10.
TRUE_DIMS = [(784, 64), (64, 64), (64, 64), (64, 64), (64, 64), (64, 10)]
NUM_LAYERS = len(TRUE_DIMS)
PAD = 128        # lane-dense feature padding (hidden 64 -> 128, logits 10 -> 128)
K1_PAD = 896     # 784 -> 7*128: lane/K-tile aligned first-layer input width


def _fused_net_kernel(x_ref, w1_ref, wr_ref, tab_ref, gb_ref, o_ref, *, batch):
    """All six layers of Net fused into one program.

    x_ref   : (B, 896)       bf16 VMEM  flattened image, cols 784.. are zero
    w1_ref  : (896, 128)     bf16 VMEM  W1.T, K rows 784.. zero, N cols 64.. zero
    wr_ref  : (5, 128, 128)  bf16 VMEM  W2..W6 transposed, zero-padded
    tab_ref : (2, 6, 128)    f32  VMEM  [0]=colsum of bf16 Wt, [1]=bias (padded)
    gb_ref  : (12,)          f32  SMEM  [g1, b1, g2, b2, ..., g6, b6]
    o_ref   : (B, 128)       f32  VMEM  padded logits (cols >= 10 are exactly 0)
    """
    tables = tab_ref[...]                     # (2, 6, PAD) f32

    def layer(h, wt_bf16, idx, k_true, relu):
        # Scalar statistics over the TRUE (unpadded) elements; padded columns of
        # h are exactly 0 so they contribute nothing to sum / sum-of-squares.
        h32 = h.astype(jnp.float32)
        inv_n = 1.0 / float(batch * k_true)              # compile-time constant
        m = jnp.sum(h32) * inv_n                         # x.mean()
        inv_rms = lax.rsqrt(jnp.sum(h32 * h32) * inv_n)  # 1/(x.norm()/sqrt(n)), EUP
        gamma = gb_ref[2 * idx]
        beta = gb_ref[2 * idx + 1]
        s = gamma * inv_rms                              # scale applied to x @ Wt
        t = beta - m * s                                 # constant fed through Wt

        # MXU matmul with bf16 operands, f32 accumulation.
        acc = jnp.dot(h.astype(jnp.bfloat16), wt_bf16,
                      preferred_element_type=jnp.float32)

        # ((x - m)/rms * gamma + beta) @ Wt + b  ==  s*(x@Wt) + t*colsum(Wt) + b
        r = s * acc + (t * tables[0, idx] + tables[1, idx])
        if relu:
            r = jnp.maximum(r, 0.0)
        return r

    h = x_ref[...]                                                # (B, 896) bf16
    h = layer(h, w1_ref[...], 0, TRUE_DIMS[0][0], relu=True)
    for i in range(1, NUM_LAYERS):
        h = layer(h, wr_ref[i - 1], i, TRUE_DIMS[i][0],
                  relu=(i < NUM_LAYERS - 1))
    o_ref[...] = h                                                # (B, PAD) f32


@jax.jit
def net_forward(x_nchw, fused_params):
    """Forward pass of Net: (B, 1, 28, 28) -> (B, 10) logits, one pallas_call.

    Works for any batch B; for throughput, batch to >=128 (v5e) / >=256 (v6e/v7x)
    rows per call.  For very large B on v7x, split the batch across the two
    TensorCores (batch grid axis + two-pass global stats) — not needed at the
    small sizes exercised here.
    """
    w1t, wrest, tables, gb = fused_params
    B = x_nchw.shape[0]
    x = x_nchw.reshape(B, 28 * 28).astype(jnp.float32)            # x.view(-1, 784)
    # Lane-align 784 -> 896 and ship to the kernel as bf16 (halves HBM/VMEM).
    x = jnp.pad(x, ((0, 0), (0, K1_PAD - 28 * 28))).astype(jnp.bfloat16)

    weight_bytes = (K1_PAD * PAD + (NUM_LAYERS - 1) * PAD * PAD) * 2
    table_bytes = 2 * NUM_LAYERS * PAD * 4 + 2 * NUM_LAYERS * 4
    io_bytes = B * K1_PAD * 2 + B * PAD * 4
    flops = 2 * B * (K1_PAD * PAD + (NUM_LAYERS - 1) * PAD * PAD) \
        + 12 * B * PAD * NUM_LAYERS
    cost = pl.CostEstimate(flops=flops, transcendentals=NUM_LAYERS,
                           bytes_accessed=weight_bytes + table_bytes + io_bytes)
    # Size the scoped VMEM limit to the real footprint (+ margin); cap below the
    # v7x 64 MiB physical ceiling so the same code is safe on every chip.
    vmem_limit = min(weight_bytes + table_bytes + io_bytes + (8 << 20), 60 << 20)

    out_pad = pl.pallas_call(
        functools.partial(_fused_net_kernel, batch=B),
        out_shape=jax.ShapeDtypeStruct((B, PAD), jnp.float32),
        in_specs=[
            pl.BlockSpec(memory_space=pltpu.MemorySpace.VMEM),    # x (bf16)
            pl.BlockSpec(memory_space=pltpu.MemorySpace.VMEM),    # W1.T  bf16
            pl.BlockSpec(memory_space=pltpu.MemorySpace.VMEM),    # W2..6.T bf16
            pl.BlockSpec(memory_space=pltpu.MemorySpace.VMEM),    # colsum/bias f32
            pl.BlockSpec(memory_space=pltpu.MemorySpace.SMEM),    # gamma/beta
        ],
        out_specs=pl.BlockSpec(memory_space=pltpu.MemorySpace.VMEM),
        compiler_params=pltpu.CompilerParams(vmem_limit_bytes=int(vmem_limit)),
        cost_estimate=cost,
    )(x, w1t, wrest, tables, gb)
    return out_pad[:, :TRUE_DIMS[-1][1]]                          # (B, 10)


def init_params(key):
    """Deterministic parameters matching Linear.reset_parameters():
       weight ~ N(0, (2/(out+in))^2), bias = 0, beta = 0, gamma = 1.
       Returns the raw (f32, PyTorch-layout) params for the references."""
    raw = []
    for i, (fin, fout) in enumerate(TRUE_DIMS):
        k = jax.random.fold_in(key, i)
        std = 2.0 / (fout + fin)
        w = jax.random.normal(k, (fout, fin), jnp.float32) * std   # (out, in)
        b = jnp.zeros((fout,), jnp.float32)
        raw.append((w, b, jnp.float32(1.0), jnp.float32(0.0)))     # gamma, beta
    return raw


def pack_params(raw):
    """Build the fused, lane-padded, bf16-weight operands for the kernel."""
    # Layer 1: (784, 64) -> (896, 128): zero rows for padded K, zero cols for
    # padded outputs (keeps padded activations exactly 0).
    w1t_f32 = jnp.zeros((K1_PAD, PAD), jnp.float32)
    w1t_f32 = w1t_f32.at[:TRUE_DIMS[0][0], :TRUE_DIMS[0][1]].set(raw[0][0].T)

    # Layers 2..6: (in, out) -> (128, 128) zero-padded.
    wrest_f32 = []
    for i in range(1, NUM_LAYERS):
        fin, fout = TRUE_DIMS[i]
        wrest_f32.append(
            jnp.zeros((PAD, PAD), jnp.float32).at[:fin, :fout].set(raw[i][0].T))
    wrest_f32 = jnp.stack(wrest_f32)                               # (5, 128, 128)

    w1t_bf = w1t_f32.astype(jnp.bfloat16)
    wrest_bf = wrest_f32.astype(jnp.bfloat16)

    # Column sums of the bf16-CAST weights (self-consistent with the MXU term),
    # accumulated in f32.
    all_wt_bf = [w1t_bf] + [wrest_bf[i] for i in range(NUM_LAYERS - 1)]
    colsums = jnp.stack([jnp.sum(wt.astype(jnp.float32), axis=0)
                         for wt in all_wt_bf])                     # (6, 128) f32

    biases = jnp.stack([
        jnp.zeros((PAD,), jnp.float32).at[:TRUE_DIMS[i][1]].set(raw[i][1])
        for i in range(NUM_LAYERS)
    ])                                                             # (6, 128) f32

    tables = jnp.stack([colsums, biases])                          # (2, 6, 128)

    gb = jnp.stack([v for (_, _, g, b) in raw for v in (g, b)]
                   ).astype(jnp.float32)                           # (12,) f32

    return (w1t_bf, wrest_bf, tables, gb)


def net_forward_ref_f32(x_nchw, raw):
    """Pure-JAX f32 reference, faithful to the PyTorch forward semantics."""
    B = x_nchw.shape[0]
    h = x_nchw.reshape(B, 28 * 28).astype(jnp.float32)
    for i, (w, b, gamma, beta) in enumerate(raw):
        m = jnp.mean(h)
        rms = jnp.sqrt(jnp.sum(h * h) / h.size)
        r = (h - m) / rms
        r = r * gamma + beta
        r = r @ w.T + b
        h = jnp.maximum(r, 0.0) if i < NUM_LAYERS - 1 else r
    return h


def net_forward_ref_mixed(x_nchw, raw):
    """Pure-JAX reference mirroring the kernel's mixed-precision math
    (bf16 ingest of x, bf16 MXU operands, f32 stats, bf16-weight colsums,
    algebraic normalization fold)."""
    B = x_nchw.shape[0]
    x = x_nchw.reshape(B, 28 * 28).astype(jnp.float32)
    h_bf = x.astype(jnp.bfloat16)              # layer-1 ingest is bf16
    h32 = h_bf.astype(jnp.float32)
    for i, (w, b, gamma, beta) in enumerate(raw):
        inv_n = 1.0 / h32.size
        m = jnp.sum(h32) * inv_n
        inv_rms = lax.rsqrt(jnp.sum(h32 * h32) * inv_n)
        s = gamma * inv_rms
        t = beta - m * s
        wt_bf = w.T.astype(jnp.bfloat16)
        acc = jnp.dot(h_bf, wt_bf, preferred_element_type=jnp.float32)
        colsum = jnp.sum(wt_bf.astype(jnp.float32), axis=0)
        r = s * acc + t * colsum + b
        if i < NUM_LAYERS - 1:
            r = jnp.maximum(r, 0.0)
        h32 = r
        h_bf = r.astype(jnp.bfloat16)
    return h32


if __name__ == "__main__":
    key = jax.random.PRNGKey(0)
    raw_params = init_params(jax.random.fold_in(key, 1))
    fused_params = pack_params(raw_params)
    x = jax.random.normal(jax.random.fold_in(key, 2), (2, 1, 28, 28), jnp.float32)

    out = net_forward(x, fused_params)
    out = jax.block_until_ready(out)
    assert out.shape == (2, 10) and out.dtype == jnp.float32

    # Tight check: kernel implements exactly its mixed-precision formulation.
    ref_mixed = net_forward_ref_mixed(x, raw_params)
    assert jnp.allclose(out, ref_mixed, atol=1e-3, rtol=1e-3), \
        "Pallas output mismatch vs mixed-precision reference"

    # Semantics check vs the f32 PyTorch-faithful reference; tolerance accounts
    # for bf16 MXU operands (input/weights/activations) across six layers.
    ref_f32 = net_forward_ref_f32(x, raw_params)
    assert jnp.allclose(out, ref_f32, atol=3e-2, rtol=3e-2), \
        "Pallas output mismatch vs f32 reference"

    print("KERNEL_OK")
</pallas_src>

<mosaic_0001>
module attributes {stable_mosaic.version = 11 : i64} {
  func.func @_fused_net_kernel(%arg0: memref<2x896xbf16, #tpu.memory_space<vmem>>, %arg1: memref<896x128xbf16, #tpu.memory_space<vmem>>, %arg2: memref<5x128x128xbf16, #tpu.memory_space<vmem>>, %arg3: memref<2x6x128xf32, #tpu.memory_space<vmem>>, %arg4: memref<12xf32, #tpu.memory_space<smem>>, %arg5: memref<2x128xf32, #tpu.memory_space<vmem>>) attributes {dimension_semantics = [], scalar_prefetch = 0 : i64, scratch_operands = 0 : i64, tpu.core_type = #tpu.core_type<tc>} {
    %c0 = arith.constant 0 : index
    %c0_0 = arith.constant 0 : index
    %c0_1 = arith.constant 0 : index
    %0 = vector.load %arg3[%c0, %c0_0, %c0_1] : memref<2x6x128xf32, #tpu.memory_space<vmem>>, vector<2x6x128xf32>
    %c0_2 = arith.constant 0 : index
    %c0_3 = arith.constant 0 : index
    %1 = vector.load %arg0[%c0_2, %c0_3] : memref<2x896xbf16, #tpu.memory_space<vmem>>, vector<2x896xbf16>
    %c0_4 = arith.constant 0 : index
    %c0_5 = arith.constant 0 : index
    %2 = vector.load %arg1[%c0_4, %c0_5] : memref<896x128xbf16, #tpu.memory_space<vmem>>, vector<896x128xbf16>
    %3 = arith.extf %1 : vector<2x896xbf16> to vector<2x896xf32>
    %4 = vector.shape_cast %3 : vector<2x896xf32> to vector<1x2x896xf32>
    %cst = arith.constant dense<0.000000e+00> : vector<1xf32>
    %5 = vector.multi_reduction <add>, %4, %cst [1, 2] : vector<1x2x896xf32> to vector<1xf32>
    %6 = vector.shape_cast %5 : vector<1xf32> to vector<1x1x1xf32>
    %7 = vector.extract %6[0, 0, 0] : f32 from vector<1x1x1xf32>
    %cst_6 = arith.constant 6.37755089E-4 : f32
    %8 = arith.mulf %7, %cst_6 : f32
    %9 = arith.mulf %3, %3 : vector<2x896xf32>
    %10 = vector.shape_cast %9 : vector<2x896xf32> to vector<1x2x896xf32>
    %cst_7 = arith.constant dense<0.000000e+00> : vector<1xf32>
    %11 = vector.multi_reduction <add>, %10, %cst_7 [1, 2] : vector<1x2x896xf32> to vector<1xf32>
    %12 = vector.shape_cast %11 : vector<1xf32> to vector<1x1x1xf32>
    %13 = vector.extract %12[0, 0, 0] : f32 from vector<1x1x1xf32>
    %cst_8 = arith.constant 6.37755089E-4 : f32
    %14 = arith.mulf %13, %cst_8 : f32
    %15 = math.rsqrt %14 : f32
    %c0_9 = arith.constant 0 : index
    %16 = memref.load %arg4[%c0_9] : memref<12xf32, #tpu.memory_space<smem>>
    %c1 = arith.constant 1 : index
    %17 = memref.load %arg4[%c1] : memref<12xf32, #tpu.memory_space<smem>>
    %18 = arith.mulf %16, %15 : f32
    %19 = arith.mulf %8, %18 : f32
    %20 = arith.subf %17, %19 : f32
    %cst_10 = arith.constant dense<0.000000e+00> : vector<2x128xf32>
    %21 = tpu.matmul %1, %2, %cst_10 {dimension_numbers = #tpu.dot_dimension_numbers<[1], [0], [0], [1], [0, 0, 1, 1], [], []>} : vector<2x896xbf16>, vector<896x128xbf16>, vector<2x128xf32> -> vector<2x128xf32>
    %22 = vector.broadcast %18 : f32 to vector<2x128xf32>
    %23 = arith.mulf %22, %21 : vector<2x128xf32>
    %24 = vector.extract_strided_slice %0 {offsets = [0, 0, 0], sizes = [1, 1, 128], strides = [1, 1, 1]} : vector<2x6x128xf32> to vector<1x1x128xf32>
    %25 = vector.shape_cast %24 : vector<1x1x128xf32> to vector<128xf32>
    %26 = vector.broadcast %20 : f32 to vector<128xf32>
    %27 = arith.mulf %26, %25 : vector<128xf32>
    %28 = vector.extract_strided_slice %0 {offsets = [1, 0, 0], sizes = [1, 1, 128], strides = [1, 1, 1]} : vector<2x6x128xf32> to vector<1x1x128xf32>
    %29 = vector.shape_cast %28 : vector<1x1x128xf32> to vector<128xf32>
    %30 = arith.addf %27, %29 : vector<128xf32>
    %31 = vector.shape_cast %30 : vector<128xf32> to vector<1x128xf32>
    %32 = vector.broadcast %31 : vector<1x128xf32> to vector<2x128xf32>
    %33 = arith.addf %23, %32 : vector<2x128xf32>
    %cst_11 = arith.constant 0.000000e+00 : f32
    %34 = vector.broadcast %cst_11 : f32 to vector<2x128xf32>
    %35 = arith.maximumf %33, %34 : vector<2x128xf32>
    %c0_12 = arith.constant 0 : index
    %c0_13 = arith.constant 0 : index
    %c0_14 = arith.constant 0 : index
    %36 = vector.load %arg2[%c0_12, %c0_13, %c0_14] : memref<5x128x128xbf16, #tpu.memory_space<vmem>>, vector<1x128x128xbf16>
    %37 = vector.shape_cast %36 : vector<1x128x128xbf16> to vector<128x128xbf16>
    %38 = vector.shape_cast %35 : vector<2x128xf32> to vector<1x2x128xf32>
    %cst_15 = arith.constant dense<0.000000e+00> : vector<1xf32>
    %39 = vector.multi_reduction <add>, %38, %cst_15 [1, 2] : vector<1x2x128xf32> to vector<1xf32>
    %40 = vector.shape_cast %39 : vector<1xf32> to vector<1x1x1xf32>
    %41 = vector.extract %40[0, 0, 0] : f32 from vector<1x1x1xf32>
    %cst_16 = arith.constant 7.812500e-03 : f32
    %42 = arith.mulf %41, %cst_16 : f32
    %43 = arith.mulf %35, %35 : vector<2x128xf32>
    %44 = vector.shape_cast %43 : vector<2x128xf32> to vector<1x2x128xf32>
    %cst_17 = arith.constant dense<0.000000e+00> : vector<1xf32>
    %45 = vector.multi_reduction <add>, %44, %cst_17 [1, 2] : vector<1x2x128xf32> to vector<1xf32>
    %46 = vector.shape_cast %45 : vector<1xf32> to vector<1x1x1xf32>
    %47 = vector.extract %46[0, 0, 0] : f32 from vector<1x1x1xf32>
    %cst_18 = arith.constant 7.812500e-03 : f32
    %48 = arith.mulf %47, %cst_18 : f32
    %49 = math.rsqrt %48 : f32
    %c2 = arith.constant 2 : index
    %50 = memref.load %arg4[%c2] : memref<12xf32, #tpu.memory_space<smem>>
    %c3 = arith.constant 3 : index
    %51 = memref.load %arg4[%c3] : memref<12xf32, #tpu.memory_space<smem>>
    %52 = arith.mulf %50, %49 : f32
    %53 = arith.mulf %42, %52 : f32
    %54 = arith.subf %51, %53 : f32
    %55 = arith.truncf %35 : vector<2x128xf32> to vector<2x128xbf16>
    %cst_19 = arith.constant dense<0.000000e+00> : vector<2x128xf32>
    %56 = tpu.matmul %55, %37, %cst_19 {dimension_numbers = #tpu.dot_dimension_numbers<[1], [0], [0], [1], [0, 0, 1, 1], [], []>} : vector<2x128xbf16>, vector<128x128xbf16>, vector<2x128xf32> -> vector<2x128xf32>
    %57 = vector.broadcast %52 : f32 to vector<2x128xf32>
    %58 = arith.mulf %57, %56 : vector<2x128xf32>
    %59 = vector.extract_strided_slice %0 {offsets = [0, 1, 0], sizes = [1, 1, 128], strides = [1, 1, 1]} : vector<2x6x128xf32> to vector<1x1x128xf32>
    %60 = vector.shape_cast %59 : vector<1x1x128xf32> to vector<128xf32>
    %61 = vector.broadcast %54 : f32 to vector<128xf32>
    %62 = arith.mulf %61, %60 : vector<128xf32>
    %63 = vector.extract_strided_slice %0 {offsets = [1, 1, 0], sizes = [1, 1, 128], strides = [1, 1, 1]} : vector<2x6x128xf32> to vector<1x1x128xf32>
    %64 = vector.shape_cast %63 : vector<1x1x128xf32> to vector<128xf32>
    %65 = arith.addf %62, %64 : vector<128xf32>
    %66 = vector.shape_cast %65 : vector<128xf32> to vector<1x128xf32>
    %67 = vector.broadcast %66 : vector<1x128xf32> to vector<2x128xf32>
    %68 = arith.addf %58, %67 : vector<2x128xf32>
    %cst_20 = arith.constant 0.000000e+00 : f32
    %69 = vector.broadcast %cst_20 : f32 to vector<2x128xf32>
    %70 = arith.maximumf %68, %69 : vector<2x128xf32>
    %c1_21 = arith.constant 1 : index
    %c0_22 = arith.constant 0 : index
    %c0_23 = arith.constant 0 : index
    %71 = vector.load %arg2[%c1_21, %c0_22, %c0_23] : memref<5x128x128xbf16, #tpu.memory_space<vmem>>, vector<1x128x128xbf16>
    %72 = vector.shape_cast %71 : vector<1x128x128xbf16> to vector<128x128xbf16>
    %73 = vector.shape_cast %70 : vector<2x128xf32> to vector<1x2x128xf32>
    %cst_24 = arith.constant dense<0.000000e+00> : vector<1xf32>
    %74 = vector.multi_reduction <add>, %73, %cst_24 [1, 2] : vector<1x2x128xf32> to vector<1xf32>
    %75 = vector.shape_cast %74 : vector<1xf32> to vector<1x1x1xf32>
    %76 = vector.extract %75[0, 0, 0] : f32 from vector<1x1x1xf32>
    %cst_25 = arith.constant 7.812500e-03 : f32
    %77 = arith.mulf %76, %cst_25 : f32
    %78 = arith.mulf %70, %70 : vector<2x128xf32>
    %79 = vector.shape_cast %78 : vector<2x128xf32> to vector<1x2x128xf32>
    %cst_26 = arith.constant dense<0.000000e+00> : vector<1xf32>
    %80 = vector.multi_reduction <add>, %79, %cst_26 [1, 2] : vector<1x2x128xf32> to vector<1xf32>
    %81 = vector.shape_cast %80 : vector<1xf32> to vector<1x1x1xf32>
    %82 = vector.extract %81[0, 0, 0] : f32 from vector<1x1x1xf32>
    %cst_27 = arith.constant 7.812500e-03 : f32
    %83 = arith.mulf %82, %cst_27 : f32
    %84 = math.rsqrt %83 : f32
    %c4 = arith.constant 4 : index
    %85 = memref.load %arg4[%c4] : memref<12xf32, #tpu.memory_space<smem>>
    %c5 = arith.constant 5 : index
    %86 = memref.load %arg4[%c5] : memref<12xf32, #tpu.memory_space<smem>>
    %87 = arith.mulf %85, %84 : f32
    %88 = arith.mulf %77, %87 : f32
    %89 = arith.subf %86, %88 : f32
    %90 = arith.truncf %70 : vector<2x128xf32> to vector<2x128xbf16>
    %cst_28 = arith.constant dense<0.000000e+00> : vector<2x128xf32>
    %91 = tpu.matmul %90, %72, %cst_28 {dimension_numbers = #tpu.dot_dimension_numbers<[1], [0], [0], [1], [0, 0, 1, 1], [], []>} : vector<2x128xbf16>, vector<128x128xbf16>, vector<2x128xf32> -> vector<2x128xf32>
    %92 = vector.broadcast %87 : f32 to vector<2x128xf32>
    %93 = arith.mulf %92, %91 : vector<2x128xf32>
    %94 = vector.extract_strided_slice %0 {offsets = [0, 2, 0], sizes = [1, 1, 128], strides = [1, 1, 1]} : vector<2x6x128xf32> to vector<1x1x128xf32>
    %95 = vector.shape_cast %94 : vector<1x1x128xf32> to vector<128xf32>
    %96 = vector.broadcast %89 : f32 to vector<128xf32>
    %97 = arith.mulf %96, %95 : vector<128xf32>
    %98 = vector.extract_strided_slice %0 {offsets = [1, 2, 0], sizes = [1, 1, 128], strides = [1, 1, 1]} : vector<2x6x128xf32> to vector<1x1x128xf32>
    %99 = vector.shape_cast %98 : vector<1x1x128xf32> to vector<128xf32>
    %100 = arith.addf %97, %99 : vector<128xf32>
    %101 = vector.shape_cast %100 : vector<128xf32> to vector<1x128xf32>
    %102 = vector.broadcast %101 : vector<1x128xf32> to vector<2x128xf32>
    %103 = arith.addf %93, %102 : vector<2x128xf32>
    %cst_29 = arith.constant 0.000000e+00 : f32
    %104 = vector.broadcast %cst_29 : f32 to vector<2x128xf32>
    %105 = arith.maximumf %103, %104 : vector<2x128xf32>
    %c2_30 = arith.constant 2 : index
    %c0_31 = arith.constant 0 : index
    %c0_32 = arith.constant 0 : index
    %106 = vector.load %arg2[%c2_30, %c0_31, %c0_32] : memref<5x128x128xbf16, #tpu.memory_space<vmem>>, vector<1x128x128xbf16>
    %107 = vector.shape_cast %106 : vector<1x128x128xbf16> to vector<128x128xbf16>
    %108 = vector.shape_cast %105 : vector<2x128xf32> to vector<1x2x128xf32>
    %cst_33 = arith.constant dense<0.000000e+00> : vector<1xf32>
    %109 = vector.multi_reduction <add>, %108, %cst_33 [1, 2] : vector<1x2x128xf32> to vector<1xf32>
    %110 = vector.shape_cast %109 : vector<1xf32> to vector<1x1x1xf32>
    %111 = vector.extract %110[0, 0, 0] : f32 from vector<1x1x1xf32>
    %cst_34 = arith.constant 7.812500e-03 : f32
    %112 = arith.mulf %111, %cst_34 : f32
    %113 = arith.mulf %105, %105 : vector<2x128xf32>
    %114 = vector.shape_cast %113 : vector<2x128xf32> to vector<1x2x128xf32>
    %cst_35 = arith.constant dense<0.000000e+00> : vector<1xf32>
    %115 = vector.multi_reduction <add>, %114, %cst_35 [1, 2] : vector<1x2x128xf32> to vector<1xf32>
    %116 = vector.shape_cast %115 : vector<1xf32> to vector<1x1x1xf32>
    %117 = vector.extract %116[0, 0, 0] : f32 from vector<1x1x1xf32>
    %cst_36 = arith.constant 7.812500e-03 : f32
    %118 = arith.mulf %117, %cst_36 : f32
    %119 = math.rsqrt %118 : f32
    %c6 = arith.constant 6 : index
    %120 = memref.load %arg4[%c6] : memref<12xf32, #tpu.memory_space<smem>>
    %c7 = arith.constant 7 : index
    %121 = memref.load %arg4[%c7] : memref<12xf32, #tpu.memory_space<smem>>
    %122 = arith.mulf %120, %119 : f32
    %123 = arith.mulf %112, %122 : f32
    %124 = arith.subf %121, %123 : f32
    %125 = arith.truncf %105 : vector<2x128xf32> to vector<2x128xbf16>
    %cst_37 = arith.constant dense<0.000000e+00> : vector<2x128xf32>
    %126 = tpu.matmul %125, %107, %cst_37 {dimension_numbers = #tpu.dot_dimension_numbers<[1], [0], [0], [1], [0, 0, 1, 1], [], []>} : vector<2x128xbf16>, vector<128x128xbf16>, vector<2x128xf32> -> vector<2x128xf32>
    %127 = vector.broadcast %122 : f32 to vector<2x128xf32>
    %128 = arith.mulf %127, %126 : vector<2x128xf32>
    %129 = vector.extract_strided_slice %0 {offsets = [0, 3, 0], sizes = [1, 1, 128], strides = [1, 1, 1]} : vector<2x6x128xf32> to vector<1x1x128xf32>
    %130 = vector.shape_cast %129 : vector<1x1x128xf32> to vector<128xf32>
    %131 = vector.broadcast %124 : f32 to vector<128xf32>
    %132 = arith.mulf %131, %130 : vector<128xf32>
    %133 = vector.extract_strided_slice %0 {offsets = [1, 3, 0], sizes = [1, 1, 128], strides = [1, 1, 1]} : vector<2x6x128xf32> to vector<1x1x128xf32>
    %134 = vector.shape_cast %133 : vector<1x1x128xf32> to vector<128xf32>
    %135 = arith.addf %132, %134 : vector<128xf32>
    %136 = vector.shape_cast %135 : vector<128xf32> to vector<1x128xf32>
    %137 = vector.broadcast %136 : vector<1x128xf32> to vector<2x128xf32>
    %138 = arith.addf %128, %137 : vector<2x128xf32>
    %cst_38 = arith.constant 0.000000e+00 : f32
    %139 = vector.broadcast %cst_38 : f32 to vector<2x128xf32>
    %140 = arith.maximumf %138, %139 : vector<2x128xf32>
    %c3_39 = arith.constant 3 : index
    %c0_40 = arith.constant 0 : index
    %c0_41 = arith.constant 0 : index
    %141 = vector.load %arg2[%c3_39, %c0_40, %c0_41] : memref<5x128x128xbf16, #tpu.memory_space<vmem>>, vector<1x128x128xbf16>
    %142 = vector.shape_cast %141 : vector<1x128x128xbf16> to vector<128x128xbf16>
    %143 = vector.shape_cast %140 : vector<2x128xf32> to vector<1x2x128xf32>
    %cst_42 = arith.constant dense<0.000000e+00> : vector<1xf32>
    %144 = vector.multi_reduction <add>, %143, %cst_42 [1, 2] : vector<1x2x128xf32> to vector<1xf32>
    %145 = vector.shape_cast %144 : vector<1xf32> to vector<1x1x1xf32>
    %146 = vector.extract %145[0, 0, 0] : f32 from vector<1x1x1xf32>
    %cst_43 = arith.constant 7.812500e-03 : f32
    %147 = arith.mulf %146, %cst_43 : f32
    %148 = arith.mulf %140, %140 : vector<2x128xf32>
    %149 = vector.shape_cast %148 : vector<2x128xf32> to vector<1x2x128xf32>
    %cst_44 = arith.constant dense<0.000000e+00> : vector<1xf32>
    %150 = vector.multi_reduction <add>, %149, %cst_44 [1, 2] : vector<1x2x128xf32> to vector<1xf32>
    %151 = vector.shape_cast %150 : vector<1xf32> to vector<1x1x1xf32>
    %152 = vector.extract %151[0, 0, 0] : f32 from vector<1x1x1xf32>
    %cst_45 = arith.constant 7.812500e-03 : f32
    %153 = arith.mulf %152, %cst_45 : f32
    %154 = math.rsqrt %153 : f32
    %c8 = arith.constant 8 : index
    %155 = memref.load %arg4[%c8] : memref<12xf32, #tpu.memory_space<smem>>
    %c9 = arith.constant 9 : index
    %156 = memref.load %arg4[%c9] : memref<12xf32, #tpu.memory_space<smem>>
    %157 = arith.mulf %155, %154 : f32
    %158 = arith.mulf %147, %157 : f32
    %159 = arith.subf %156, %158 : f32
    %160 = arith.truncf %140 : vector<2x128xf32> to vector<2x128xbf16>
    %cst_46 = arith.constant dense<0.000000e+00> : vector<2x128xf32>
    %161 = tpu.matmul %160, %142, %cst_46 {dimension_numbers = #tpu.dot_dimension_numbers<[1], [0], [0], [1], [0, 0, 1, 1], [], []>} : vector<2x128xbf16>, vector<128x128xbf16>, vector<2x128xf32> -> vector<2x128xf32>
    %162 = vector.broadcast %157 : f32 to vector<2x128xf32>
    %163 = arith.mulf %162, %161 : vector<2x128xf32>
    %164 = vector.extract_strided_slice %0 {offsets = [0, 4, 0], sizes = [1, 1, 128], strides = [1, 1, 1]} : vector<2x6x128xf32> to vector<1x1x128xf32>
    %165 = vector.shape_cast %164 : vector<1x1x128xf32> to vector<128xf32>
    %166 = vector.broadcast %159 : f32 to vector<128xf32>
    %167 = arith.mulf %166, %165 : vector<128xf32>
    %168 = vector.extract_strided_slice %0 {offsets = [1, 4, 0], sizes = [1, 1, 128], strides = [1, 1, 1]} : vector<2x6x128xf32> to vector<1x1x128xf32>
    %169 = vector.shape_cast %168 : vector<1x1x128xf32> to vector<128xf32>
    %170 = arith.addf %167, %169 : vector<128xf32>
    %171 = vector.shape_cast %170 : vector<128xf32> to vector<1x128xf32>
    %172 = vector.broadcast %171 : vector<1x128xf32> to vector<2x128xf32>
    %173 = arith.addf %163, %172 : vector<2x128xf32>
    %cst_47 = arith.constant 0.000000e+00 : f32
    %174 = vector.broadcast %cst_47 : f32 to vector<2x128xf32>
    %175 = arith.maximumf %173, %174 : vector<2x128xf32>
    %c4_48 = arith.constant 4 : index
    %c0_49 = arith.constant 0 : index
    %c0_50 = arith.constant 0 : index
    %176 = vector.load %arg2[%c4_48, %c0_49, %c0_50] : memref<5x128x128xbf16, #tpu.memory_space<vmem>>, vector<1x128x128xbf16>
    %177 = vector.shape_cast %176 : vector<1x128x128xbf16> to vector<128x128xbf16>
    %178 = vector.shape_cast %175 : vector<2x128xf32> to vector<1x2x128xf32>
    %cst_51 = arith.constant dense<0.000000e+00> : vector<1xf32>
    %179 = vector.multi_reduction <add>, %178, %cst_51 [1, 2] : vector<1x2x128xf32> to vector<1xf32>
    %180 = vector.shape_cast %179 : vector<1xf32> to vector<1x1x1xf32>
    %181 = vector.extract %180[0, 0, 0] : f32 from vector<1x1x1xf32>
    %cst_52 = arith.constant 7.812500e-03 : f32
    %182 = arith.mulf %181, %cst_52 : f32
    %183 = arith.mulf %175, %175 : vector<2x128xf32>
    %184 = vector.shape_cast %183 : vector<2x128xf32> to vector<1x2x128xf32>
    %cst_53 = arith.constant dense<0.000000e+00> : vector<1xf32>
    %185 = vector.multi_reduction <add>, %184, %cst_53 [1, 2] : vector<1x2x128xf32> to vector<1xf32>
    %186 = vector.shape_cast %185 : vector<1xf32> to vector<1x1x1xf32>
    %187 = vector.extract %186[0, 0, 0] : f32 from vector<1x1x1xf32>
    %cst_54 = arith.constant 7.812500e-03 : f32
    %188 = arith.mulf %187, %cst_54 : f32
    %189 = math.rsqrt %188 : f32
    %c10 = arith.constant 10 : index
    %190 = memref.load %arg4[%c10] : memref<12xf32, #tpu.memory_space<smem>>
    %c11 = arith.constant 11 : index
    %191 = memref.load %arg4[%c11] : memref<12xf32, #tpu.memory_space<smem>>
    %192 = arith.mulf %190, %189 : f32
    %193 = arith.mulf %182, %192 : f32
    %194 = arith.subf %191, %193 : f32
    %195 = arith.truncf %175 : vector<2x128xf32> to vector<2x128xbf16>
    %cst_55 = arith.constant dense<0.000000e+00> : vector<2x128xf32>
    %196 = tpu.matmul %195, %177, %cst_55 {dimension_numbers = #tpu.dot_dimension_numbers<[1], [0], [0], [1], [0, 0, 1, 1], [], []>} : vector<2x128xbf16>, vector<128x128xbf16>, vector<2x128xf32> -> vector<2x128xf32>
    %197 = vector.broadcast %192 : f32 to vector<2x128xf32>
    %198 = arith.mulf %197, %196 : vector<2x128xf32>
    %199 = vector.extract_strided_slice %0 {offsets = [0, 5, 0], sizes = [1, 1, 128], strides = [1, 1, 1]} : vector<2x6x128xf32> to vector<1x1x128xf32>
    %200 = vector.shape_cast %199 : vector<1x1x128xf32> to vector<128xf32>
    %201 = vector.broadcast %194 : f32 to vector<128xf32>
    %202 = arith.mulf %201, %200 : vector<128xf32>
    %203 = vector.extract_strided_slice %0 {offsets = [1, 5, 0], sizes = [1, 1, 128], strides = [1, 1, 1]} : vector<2x6x128xf32> to vector<1x1x128xf32>
    %204 = vector.shape_cast %203 : vector<1x1x128xf32> to vector<128xf32>
    %205 = arith.addf %202, %204 : vector<128xf32>
    %206 = vector.shape_cast %205 : vector<128xf32> to vector<1x128xf32>
    %207 = vector.broadcast %206 : vector<1x128xf32> to vector<2x128xf32>
    %208 = arith.addf %198, %207 : vector<2x128xf32>
    %c0_56 = arith.constant 0 : index
    %c0_57 = arith.constant 0 : index
    %209 = vector.load %arg5[%c0_56, %c0_57] : memref<2x128xf32, #tpu.memory_space<vmem>>, vector<2x128xf32>
    tpu.vector_store %arg5[%c0_56, %c0_57], %208 {strides = array<i32>} : memref<2x128xf32, #tpu.memory_space<vmem>>, vector<2x128xf32>,
    return
  }
}

</mosaic_0001>

<llo_original>
// kernel: net_forward.1
$region0: #{net_forward.1}
  #allocation0 [shape = 'u32[]', space=smem, size = 0x4, offset = 0x4, fixed_abs, tag = 'smem constant byte address 0x4 - core index']
  #allocation1 [shape = 'u32[144,128]{1,0:T(1,128)}', space=vmem, size = 0x12000, scoped, tag = 'internal scratch']
  %s0 = inlined_call_operand.vmem [shape: bf16[2,896], index: 0, kind: input, shape index: {}]
  %s1 = inlined_call_operand.hbm [shape: bf16[896,128], index: 1, kind: input, shape index: {}]
  %s2 = inlined_call_operand.hbm [shape: bf16[5,128,128], index: 2, kind: input, shape index: {}]
  %s3 = inlined_call_operand.vmem [shape: f32[2,6,128], index: 3, kind: input, shape index: {}]
  %s4 = inlined_call_operand.vmem [shape: f32[12], index: 4, kind: input, shape index: {}]
  %s5 = inlined_call_operand.hbm [shape: f32[2,128], index: 5, kind: output, shape index: {}]
  %s6 = sld [smem:[#allocation0]]
  $region42: #{net_forward.1} parent=0
    _
  %s8 = ssub.s32 1, %s6
  %s9 = scalar_select 0, %s8, %s6
  $region1: #{net_forward.1} parent=0
    #allocation2 [shape = 'u8[229376]{0}', space=vmem, size = 0x38000, scoped, tag = 'input window, operand 1, single buffered']
    #allocation3 [shape = 's32[1]{0}', space=sflag, size = 0x4, scoped, tag = 'scoped memory for net_forward.1']
    #allocation4 [shape = 's32[1]{0}', space=sflag, size = 0x4, scoped, tag = 'scoped memory for net_forward.1']
    #allocation5 [shape = 's32[1]{0}', space=sflag, size = 0x4, scoped, tag = 'scoped memory for net_forward.1']
    #allocation6 [shape = 'u8[163840]{0}', space=vmem, size = 0x28000, scoped, tag = 'input window, operand 2, single buffered']
    #allocation7 [shape = 's32[1]{0}', space=sflag, size = 0x4, scoped, tag = 'scoped memory for net_forward.1']
    #allocation8 [shape = 'u8[512]{0}', space=smem, size = 0x200, scoped, tag = 'input window, operand 4, single buffered']
    #allocation9 [shape = 'u8[1024]{0}', space=vmem, size = 0x400, scoped, tag = 'output window, operand 0, single buffered']
    %10 = vsyncpa [#allocation3], 0
    %11 = vsyncpa [#allocation7], 0
    %12 = vsyncpa [#allocation5], 0
    %13 = vsyncpa [#allocation4], 0
    // Predicated region
    $region2: #{net_forward.1} parent=1 // pred_check
      _
    $region3: #{net_forward.1} parent=1 // pred_check_branch
      %15 = sbr.rel (0) target = $region5
    $region4: #{net_forward.1} parent=1 // pred_region
      _
    $region5: #{net_forward.1} parent=1 // pred_fallthru
      _
    // Predicated region
    $region6: #{net_forward.1} parent=1 // pred_check
      _
    $region7: #{net_forward.1} parent=1 // pred_check_branch
      %17 = sbr.rel (0) target = $region9
    $region8: #{net_forward.1} parent=1 // pred_region
      %s19 = ssub.s32 7168, 7168
      %20 = vsyncadd [#allocation3], %s19
      %s21 = sshll.u32 [#allocation2], 4
      %s22 = int_to_ptr.vmem [resolvable:$true] %s21
      %27 = dma.hbm_to_vmem [thread:$0]  %s1, 7168, %s22, [#allocation3], 64, 64, 4
    $region9: #{net_forward.1} parent=1 // pred_fallthru
      _
    // Predicated region
    $region10: #{net_forward.1} parent=1 // pred_check
      _
    $region11: #{net_forward.1} parent=1 // pred_check_branch
      %29 = sbr.rel (0) target = $region13
    $region12: #{net_forward.1} parent=1 // pred_region
      %s31 = ssub.s32 5120, 5120
      %32 = vsyncadd [#allocation7], %s31
      %s33 = sshll.u32 [#allocation6], 4
      %s34 = int_to_ptr.vmem [resolvable:$true] %s33
      %39 = dma.hbm_to_vmem [thread:$0]  %s2, 5120, %s34, [#allocation7], 64, 64, 4
    $region13: #{net_forward.1} parent=1 // pred_fallthru
      _
    // Predicated region
    $region14: #{net_forward.1} parent=1 // pred_check
      _
    $region15: #{net_forward.1} parent=1 // pred_check_branch
      %41 = sbr.rel (0) target = $region17
    $region16: #{net_forward.1} parent=1 // pred_region
      _
    $region17: #{net_forward.1} parent=1 // pred_fallthru
      _
    // Predicated region
    $region18: #{net_forward.1} parent=1 // pred_check
      _
    $region19: #{net_forward.1} parent=1 // pred_check_branch
      %43 = sbr.rel (0) target = $region21
    $region20: #{net_forward.1} parent=1 // pred_region
      %s45 = ssub.s32 16, 16
      %46 = vsyncadd [#allocation5], %s45
      %s48 = sshll.u32 %s4, 4
      %s49 = int_to_ptr.vmem [resolvable:$true] %s48
      %51 = dma.vmem_to_smem %s49, 16, [#allocation8], [#allocation5]
    $region21: #{net_forward.1} parent=1 // pred_fallthru
      _
    // Predicated region
    $region22: #{net_forward.1} parent=1 // pred_check
      _
    $region23: #{net_forward.1} parent=1 // pred_check_branch
      %53 = sbr.rel (0) target = $region25
    $region24: #{net_forward.1} parent=1 // pred_region
      %54 = dma.done [#allocation3], 7168
    $region25: #{net_forward.1} parent=1 // pred_fallthru
      _
    // Predicated region
    $region26: #{net_forward.1} parent=1 // pred_check
      _
    $region27: #{net_forward.1} parent=1 // pred_check_branch
      %56 = sbr.rel (0) target = $region29
    $region28: #{net_forward.1} parent=1 // pred_region
      %57 = dma.done [#allocation7], 5120
    $region29: #{net_forward.1} parent=1 // pred_fallthru
      _
    // Predicated region
    $region30: #{net_forward.1} parent=1 // pred_check
      _
    $region31: #{net_forward.1} parent=1 // pred_check_branch
      %59 = sbr.rel (0) target = $region33
    $region32: #{net_forward.1} parent=1 // pred_region
      %60 = dma.done [#allocation5], 16
    $region33: #{net_forward.1} parent=1 // pred_fallthru
      _
    %61 = sfence
    %v63 = vld [vmem:[%s3] sm:$0x3f]
    %v64 = vld [vmem:[%s3 + $0x8] sm:$0x3f]
    %v65 = vld [vmem:[%s0] sm:$0x7f]
    %v66 = vld [vmem:[#allocation2] sm:$0xf]
    %v67 = vld [vmem:[#allocation2 + $0x4] sm:$0xf]
    %v68 = vld [vmem:[#allocation2 + $0x8] sm:$0xf]
    %v69 = vld [vmem:[#allocation2 + $0xc] sm:$0xf]
    %v70 = vld [vmem:[#allocation2 + $0x10] sm:$0xf]
    %v71 = vld [vmem:[#allocation2 + $0x14] sm:$0xf]
    %v72 = vld [vmem:[#allocation2 + $0x18] sm:$0xf]
    %v73 = vld [vmem:[#allocation2 + $0x1c] sm:$0xf]
    %v74 = vld [vmem:[#allocation2 + $0x20] sm:$0xf]
    %v75 = vld [vmem:[#allocation2 + $0x24] sm:$0xf]
    %v76 = vld [vmem:[#allocation2 + $0x28] sm:$0xf]
    %v77 = vld [vmem:[#allocation2 + $0x2c] sm:$0xf]
    %v78 = vld [vmem:[#allocation2 + $0x30] sm:$0xf]
    %v79 = vld [vmem:[#allocation2 + $0x34] sm:$0xf]
    %v80 = vld [vmem:[#allocation2 + $0x38] sm:$0xf]
    %v81 = vld [vmem:[#allocation2 + $0x3c] sm:$0xf]
    %v82 = vld [vmem:[#allocation2 + $0x40] sm:$0xf]
    %v83 = vld [vmem:[#allocation2 + $0x44] sm:$0xf]
    %v84 = vld [vmem:[#allocation2 + $0x48] sm:$0xf]
    %v85 = vld [vmem:[#allocation2 + $0x4c] sm:$0xf]
    %v86 = vld [vmem:[#allocation2 + $0x50] sm:$0xf]
    %v87 = vld [vmem:[#allocation2 + $0x54] sm:$0xf]
    %v88 = vld [vmem:[#allocation2 + $0x58] sm:$0xf]
    %v89 = vld [vmem:[#allocation2 + $0x5c] sm:$0xf]
    %v90 = vld [vmem:[#allocation2 + $0x60] sm:$0xf]
    %v91 = vld [vmem:[#allocation2 + $0x64] sm:$0xf]
    %v92 = vld [vmem:[#allocation2 + $0x68] sm:$0xf]
    %v93 = vld [vmem:[#allocation2 + $0x6c] sm:$0xf]
    %v94 = vld [vmem:[#allocation2 + $0x70] sm:$0xf]
    %v95 = vld [vmem:[#allocation2 + $0x74] sm:$0xf]
    %v96 = vld [vmem:[#allocation2 + $0x78] sm:$0xf]
    %v97 = vld [vmem:[#allocation2 + $0x7c] sm:$0xf]
    %v98 = vld [vmem:[#allocation2 + $0x80] sm:$0xf]
    %v99 = vld [vmem:[#allocation2 + $0x84] sm:$0xf]
    %v100 = vld [vmem:[#allocation2 + $0x88] sm:$0xf]
    %v101 = vld [vmem:[#allocation2 + $0x8c] sm:$0xf]
    %v102 = vld [vmem:[#allocation2 + $0x90] sm:$0xf]
    %v103 = vld [vmem:[#allocation2 + $0x94] sm:$0xf]
    %v104 = vld [vmem:[#allocation2 + $0x98] sm:$0xf]
    %v105 = vld [vmem:[#allocation2 + $0x9c] sm:$0xf]
    %v106 = vld [vmem:[#allocation2 + $0xa0] sm:$0xf]
    %v107 = vld [vmem:[#allocation2 + $0xa4] sm:$0xf]
    %v108 = vld [vmem:[#allocation2 + $0xa8] sm:$0xf]
    %v109 = vld [vmem:[#allocation2 + $0xac] sm:$0xf]
    %v110 = vld [vmem:[#allocation2 + $0xb0] sm:$0xf]
    %v111 = vld [vmem:[#allocation2 + $0xb4] sm:$0xf]
    %v112 = vld [vmem:[#allocation2 + $0xb8] sm:$0xf]
    %v113 = vld [vmem:[#allocation2 + $0xbc] sm:$0xf]
    %v114 = vld [vmem:[#allocation2 + $0xc0] sm:$0xf]
    %v115 = vld [vmem:[#allocation2 + $0xc4] sm:$0xf]
    %v116 = vld [vmem:[#allocation2 + $0xc8] sm:$0xf]
    %v117 = vld [vmem:[#allocation2 + $0xcc] sm:$0xf]
    %v118 = vld [vmem:[#allocation2 + $0xd0] sm:$0xf]
    %v119 = vld [vmem:[#allocation2 + $0xd4] sm:$0xf]
    %v120 = vld [vmem:[#allocation2 + $0xd8] sm:$0xf]
    %v121 = vld [vmem:[#allocation2 + $0xdc] sm:$0xf]
    %v122 = vld [vmem:[#allocation2 + $0xe0] sm:$0xf]
    %v123 = vld [vmem:[#allocation2 + $0xe4] sm:$0xf]
    %v124 = vld [vmem:[#allocation2 + $0xe8] sm:$0xf]
    %v125 = vld [vmem:[#allocation2 + $0xec] sm:$0xf]
    %v126 = vld [vmem:[#allocation2 + $0xf0] sm:$0xf]
    %v127 = vld [vmem:[#allocation2 + $0xf4] sm:$0xf]
    %v128 = vld [vmem:[#allocation2 + $0xf8] sm:$0xf]
    %v129 = vld [vmem:[#allocation2 + $0xfc] sm:$0xf]
    %v130 = vld [vmem:[#allocation2 + $0x100] sm:$0xf]
    %v131 = vld [vmem:[#allocation2 + $0x104] sm:$0xf]
    %v132 = vld [vmem:[#allocation2 + $0x108] sm:$0xf]
    %v133 = vld [vmem:[#allocation2 + $0x10c] sm:$0xf]
    %v134 = vld [vmem:[#allocation2 + $0x110] sm:$0xf]
    %v135 = vld [vmem:[#allocation2 + $0x114] sm:$0xf]
    %v136 = vld [vmem:[#allocation2 + $0x118] sm:$0xf]
    %v137 = vld [vmem:[#allocation2 + $0x11c] sm:$0xf]
    %v138 = vld [vmem:[#allocation2 + $0x120] sm:$0xf]
    %v139 = vld [vmem:[#allocation2 + $0x124] sm:$0xf]
    %v140 = vld [vmem:[#allocation2 + $0x128] sm:$0xf]
    %v141 = vld [vmem:[#allocation2 + $0x12c] sm:$0xf]
    %v142 = vld [vmem:[#allocation2 + $0x130] sm:$0xf]
    %v143 = vld [vmem:[#allocation2 + $0x134] sm:$0xf]
    %v144 = vld [vmem:[#allocation2 + $0x138] sm:$0xf]
    %v145 = vld [vmem:[#allocation2 + $0x13c] sm:$0xf]
    %v146 = vld [vmem:[#allocation2 + $0x140] sm:$0xf]
    %v147 = vld [vmem:[#allocation2 + $0x144] sm:$0xf]
    %v148 = vld [vmem:[#allocation2 + $0x148] sm:$0xf]
    %v149 = vld [vmem:[#allocation2 + $0x14c] sm:$0xf]
    %v150 = vld [vmem:[#allocation2 + $0x150] sm:$0xf]
    %v151 = vld [vmem:[#allocation2 + $0x154] sm:$0xf]
    %v152 = vld [vmem:[#allocation2 + $0x158] sm:$0xf]
    %v153 = vld [vmem:[#allocation2 + $0x15c] sm:$0xf]
    %v154 = vld [vmem:[#allocation2 + $0x160] sm:$0xf]
    %v155 = vld [vmem:[#allocation2 + $0x164] sm:$0xf]
    %v156 = vld [vmem:[#allocation2 + $0x168] sm:$0xf]
    %v157 = vld [vmem:[#allocation2 + $0x16c] sm:$0xf]
    %v158 = vld [vmem:[#allocation2 + $0x170] sm:$0xf]
    %v159 = vld [vmem:[#allocation2 + $0x174] sm:$0xf]
    %v160 = vld [vmem:[#allocation2 + $0x178] sm:$0xf]
    %v161 = vld [vmem:[#allocation2 + $0x17c] sm:$0xf]
    %v162 = vld [vmem:[#allocation2 + $0x180] sm:$0xf]
    %v163 = vld [vmem:[#allocation2 + $0x184] sm:$0xf]
    %v164 = vld [vmem:[#allocation2 + $0x188] sm:$0xf]
    %v165 = vld [vmem:[#allocation2 + $0x18c] sm:$0xf]
    %v166 = vld [vmem:[#allocation2 + $0x190] sm:$0xf]
    %v167 = vld [vmem:[#allocation2 + $0x194] sm:$0xf]
    %v168 = vld [vmem:[#allocation2 + $0x198] sm:$0xf]
    %v169 = vld [vmem:[#allocation2 + $0x19c] sm:$0xf]
    %v170 = vld [vmem:[#allocation2 + $0x1a0] sm:$0xf]
    %v171 = vld [vmem:[#allocation2 + $0x1a4] sm:$0xf]
    %v172 = vld [vmem:[#allocation2 + $0x1a8] sm:$0xf]
    %v173 = vld [vmem:[#allocation2 + $0x1ac] sm:$0xf]
    %v174 = vld [vmem:[#allocation2 + $0x1b0] sm:$0xf]
    %v175 = vld [vmem:[#allocation2 + $0x1b4] sm:$0xf]
    %v176 = vld [vmem:[#allocation2 + $0x1b8] sm:$0xf]
    %v177 = vld [vmem:[#allocation2 + $0x1bc] sm:$0xf]
    %v178 = vunpack.c.l.bf16 %v65
    %v179 = vunpack.c.h.bf16 %v65
    %v182 = vcombine.high %v178, %v178
    %v184 = vunpack.c.l.s4 1983009808
    %v185 = vunpack.c.0.s8 %v184
    %v186 = vlaneseq
    %v187 = vshrl.u32 %v186, 7
    %v188 = vsub.s32 %v185, %v187
    %v189 = vrot.slane %v178, %v188
    %v191 = vunpack.c.l.s4 1983009808
    %v192 = vunpack.c.0.s8 %v191
    %v193 = vlaneseq
    %v194 = vshrl.u32 %v193, 7
    %v195 = vsub.s32 %v192, %v194
    %v196 = vrot.slane %v182, %v195
    %v197 = vcombine.high %v189, %v189
    %v198 = vcombine.high %v196, %v196
    %v199 = vcombine.high %v179, %v179
    %v201 = vunpack.c.l.s4 1983009808
    %v202 = vunpack.c.0.s8 %v201
    %v203 = vlaneseq
    %v204 = vshrl.u32 %v203, 7
    %v205 = vsub.s32 %v202, %v204
    %v206 = vrot.slane %v179, %v205
    %v208 = vunpack.c.l.s4 1983009808
    %v209 = vunpack.c.0.s8 %v208
    %v210 = vlaneseq
    %v211 = vshrl.u32 %v210, 7
    %v212 = vsub.s32 %v209, %v211
    %v213 = vrot.slane %v199, %v212
    %v214 = vcombine.high %v206, %v206
    %vm222 = vcmask 1041408
    %v223 = vsel %vm222, %v189, 0.0
    %v224 = vsel %vm222, %v197, 0.0
    %v225 = vadd.f32 %v223, %v224
    %v226 = vsel %vm222, %v196, 0.0
    %v227 = vadd.f32 %v225, %v226
    %v228 = vsel %vm222, %v198, 0.0
    %v229 = vadd.f32 %v227, %v228
    %v230 = vsel %vm222, %v206, 0.0
    %v231 = vadd.f32 %v229, %v230
    %v232 = vsel %vm222, %v214, 0.0
    %v233 = vadd.f32 %v231, %v232
    %v234 = vsel %vm222, %v213, 0.0
    %v235 = vadd.f32 %v233, %v234
    %236 = vadd.xlane.f32.xlu0 %v235
    %v237 = vpop.xlane.xlu0 %236
    %v238 = vrot.slane %v237, 4
    %v239 = vadd.f32 %v237, %v238
    %v240 = vrot.slane %v239, 2
    %v241 = vadd.f32 %v239, %v240
    %v242 = vrot.slane %v241, 1
    %v243 = vadd.f32 %v241, %v242
    %s244 = vtos %v243
    %s245 = smul.f32 %s244, 0.0006377551
    %v246 = vmul.f32 %v178, %v178
    %v247 = vmul.f32 %v179, %v179
    %v250 = vcombine.high %v246, %v246
    %v252 = vunpack.c.l.s4 1983009808
    %v253 = vunpack.c.0.s8 %v252
    %v254 = vlaneseq
    %v255 = vshrl.u32 %v254, 7
    %v256 = vsub.s32 %v253, %v255
    %v257 = vrot.slane %v246, %v256
    %v259 = vunpack.c.l.s4 1983009808
    %v260 = vunpack.c.0.s8 %v259
    %v261 = vlaneseq
    %v262 = vshrl.u32 %v261, 7
    %v263 = vsub.s32 %v260, %v262
    %v264 = vrot.slane %v250, %v263
    %v265 = vcombine.high %v257, %v257
    %v266 = vcombine.high %v264, %v264
    %v267 = vcombine.high %v247, %v247
    %v269 = vunpack.c.l.s4 1983009808
    %v270 = vunpack.c.0.s8 %v269
    %v271 = vlaneseq
    %v272 = vshrl.u32 %v271, 7
    %v273 = vsub.s32 %v270, %v272
    %v274 = vrot.slane %v247, %v273
    %v276 = vunpack.c.l.s4 1983009808
    %v277 = vunpack.c.0.s8 %v276
    %v278 = vlaneseq
    %v279 = vshrl.u32 %v278, 7
    %v280 = vsub.s32 %v277, %v279
    %v281 = vrot.slane %v267, %v280
    %v282 = vcombine.high %v274, %v274
    %v290 = vsel %vm222, %v257, 0.0
    %v291 = vsel %vm222, %v265, 0.0
    %v292 = vadd.f32 %v290, %v291
    %v293 = vsel %vm222, %v264, 0.0
    %v294 = vadd.f32 %v292, %v293
    %v295 = vsel %vm222, %v266, 0.0
    %v296 = vadd.f32 %v294, %v295
    %v297 = vsel %vm222, %v274, 0.0
    %v298 = vadd.f32 %v296, %v297
    %v299 = vsel %vm222, %v282, 0.0
    %v300 = vadd.f32 %v298, %v299
    %v301 = vsel %vm222, %v281, 0.0
    %v302 = vadd.f32 %v300, %v301
    %303 = vadd.xlane.f32.xlu0 %v302
    %v304 = vpop.xlane.xlu0 %303
    %v305 = vrot.slane %v304, 4
    %v306 = vadd.f32 %v304, %v305
    %v307 = vrot.slane %v306, 2
    %v308 = vadd.f32 %v306, %v307
    %v309 = vrot.slane %v308, 1
    %v310 = vadd.f32 %v308, %v309
    %s311 = vtos %v310
    %s312 = smul.f32 %s311, 0.0006377551
    %v313 = vstv %s312
    %v314 = vrsqrt.pop %v313
    %s315 = vtos %v314
    %s316 = sld [smem:[#allocation8]]
    %s317 = sld [smem:[#allocation8 + $0x1]]
    %s318 = smul.f32 %s316, %s315
    %s319 = smul.f32 %s245, %s318
    %s320 = ssub.f32 %s317, %s319
    %v322 = vcombine.high %v65, %v65
    %v324 = vunpack.c.l.s4 1966171168
    %v325 = vunpack.c.0.s8 %v324
    %v326 = vlaneseq
    %v327 = vshrl.u32 %v326, 7
    %v328 = vsub.s32 %v325, %v327
    %v329 = vrot.slane %v65, %v328
    %v331 = vunpack.c.l.s4 1966171168
    %v332 = vunpack.c.0.s8 %v331
    %v333 = vlaneseq
    %v334 = vshrl.u32 %v333, 7
    %v335 = vsub.s32 %v332, %v334
    %v336 = vrot.slane %v322, %v335
    %v337 = vcombine.high %v329, %v329
    %v338 = vcombine.high %v336, %v336
    %v340 = vunpack.c.l.s4 1966171168
    %v341 = vunpack.c.0.s8 %v340
    %v342 = vlaneseq
    %v343 = vshrl.u32 %v342, 7
    %v344 = vsub.s32 %v341, %v343
    %v345 = vrot.slane %v329, %v344
    %v347 = vunpack.c.l.s4 1966171168
    %v348 = vunpack.c.0.s8 %v347
    %v349 = vlaneseq
    %v350 = vshrl.u32 %v349, 7
    %v351 = vsub.s32 %v348, %v350
    %v352 = vrot.slane %v336, %v351
    %v354 = vunpack.c.l.s4 1966171168
    %v355 = vunpack.c.0.s8 %v354
    %v356 = vlaneseq
    %v357 = vshrl.u32 %v356, 7
    %v358 = vsub.s32 %v355, %v357
    %v359 = vrot.slane %v337, %v358
    %v361 = vunpack.c.l.s4 1966171168
    %v362 = vunpack.c.0.s8 %v361
    %v363 = vlaneseq
    %v364 = vshrl.u32 %v363, 7
    %v365 = vsub.s32 %v362, %v364
    %v366 = vrot.slane %v338, %v365
    %v367 = vcombine.high %v345, %v345
    %v368 = vcombine.high %v352, %v352
    %v369 = vcombine.high %v359, %v359
    %v489 = vunpack.c.l.b16 %v66
    %v490 = vunpack.c.l.b16 %v67
    %v491 = vunpack.c.l.b16 %v68
    %v492 = vunpack.c.l.b16 %v69
    %v493 = vunpack.c.l.b16 %v70
    %v494 = vunpack.c.l.b16 %v71
    %v495 = vunpack.c.l.b16 %v72
    %v496 = vunpack.c.l.b16 %v73
    %v497 = vunpack.c.l.b16 %v74
    %v498 = vunpack.c.l.b16 %v75
    %v499 = vunpack.c.l.b16 %v76
    %v500 = vunpack.c.l.b16 %v77
    %v501 = vunpack.c.l.b16 %v78
    %v502 = vunpack.c.l.b16 %v79
    %v503 = vunpack.c.l.b16 %v80
    %v504 = vunpack.c.l.b16 %v81
    %v505 = vunpack.c.l.b16 %v82
    %v506 = vunpack.c.l.b16 %v83
    %v507 = vunpack.c.l.b16 %v84
    %v508 = vunpack.c.l.b16 %v85
    %v509 = vunpack.c.l.b16 %v86
    %v510 = vunpack.c.l.b16 %v87
    %v511 = vunpack.c.l.b16 %v88
    %v512 = vunpack.c.l.b16 %v89
    %v513 = vunpack.c.l.b16 %v90
    %v514 = vunpack.c.l.b16 %v91
    %v515 = vunpack.c.l.b16 %v92
    %v516 = vunpack.c.l.b16 %v93
    %v517 = vunpack.c.l.b16 %v94
    %v518 = vunpack.c.l.b16 %v95
    %v519 = vunpack.c.l.b16 %v96
    %v520 = vunpack.c.l.b16 %v97
    %v521 = vunpack.c.l.b16 %v98
    %v522 = vunpack.c.l.b16 %v99
    %v523 = vunpack.c.l.b16 %v100
    %v524 = vunpack.c.l.b16 %v101
    %v525 = vunpack.c.l.b16 %v102
    %v526 = vunpack.c.l.b16 %v103
    %v527 = vunpack.c.l.b16 %v104
    %v528 = vunpack.c.l.b16 %v105
    %v529 = vunpack.c.l.b16 %v106
    %v530 = vunpack.c.l.b16 %v107
    %v531 = vunpack.c.l.b16 %v108
    %v532 = vunpack.c.l.b16 %v109
    %v533 = vunpack.c.l.b16 %v110
    %v534 = vunpack.c.l.b16 %v111
    %v535 = vunpack.c.l.b16 %v112
    %v536 = vunpack.c.l.b16 %v113
    %v537 = vunpack.c.l.b16 %v114
    %v538 = vunpack.c.l.b16 %v115
    %v539 = vunpack.c.l.b16 %v116
    %v540 = vunpack.c.l.b16 %v117
    %v541 = vunpack.c.l.b16 %v118
    %v542 = vunpack.c.l.b16 %v119
    %v543 = vunpack.c.l.b16 %v120
    %v544 = vunpack.c.l.b16 %v121
    %v545 = vunpack.c.l.b16 %v122
    %v546 = vunpack.c.l.b16 %v123
    %v547 = vunpack.c.l.b16 %v124
    %v548 = vunpack.c.l.b16 %v125
    %v549 = vunpack.c.l.b16 %v126
    %v550 = vunpack.c.l.b16 %v127
    %v551 = vunpack.c.l.b16 %v128
    %v552 = vunpack.c.l.b16 %v129
    %v553 = vunpack.c.l.b16 %v130
    %v554 = vunpack.c.l.b16 %v131
    %v555 = vunpack.c.l.b16 %v132
    %v556 = vunpack.c.l.b16 %v133
    %v557 = vunpack.c.l.b16 %v134
    %v558 = vunpack.c.l.b16 %v135
    %v559 = vunpack.c.l.b16 %v136
    %v560 = vunpack.c.l.b16 %v137
    %v561 = vunpack.c.l.b16 %v138
    %v562 = vunpack.c.l.b16 %v139
    %v563 = vunpack.c.l.b16 %v140
    %v564 = vunpack.c.l.b16 %v141
    %v565 = vunpack.c.l.b16 %v142
    %v566 = vunpack.c.l.b16 %v143
    %v567 = vunpack.c.l.b16 %v144
    %v568 = vunpack.c.l.b16 %v145
    %v569 = vunpack.c.l.b16 %v146
    %v570 = vunpack.c.l.b16 %v147
    %v571 = vunpack.c.l.b16 %v148
    %v572 = vunpack.c.l.b16 %v149
    %v573 = vunpack.c.l.b16 %v150
    %v574 = vunpack.c.l.b16 %v151
    %v575 = vunpack.c.l.b16 %v152
    %v576 = vunpack.c.l.b16 %v153
    %v577 = vunpack.c.l.b16 %v154
    %v578 = vunpack.c.l.b16 %v155
    %v579 = vunpack.c.l.b16 %v156
    %v580 = vunpack.c.l.b16 %v157
    %v581 = vunpack.c.l.b16 %v158
    %v582 = vunpack.c.l.b16 %v159
    %v583 = vunpack.c.l.b16 %v160
    %v584 = vunpack.c.l.b16 %v161
    %v585 = vunpack.c.l.b16 %v162
    %v586 = vunpack.c.l.b16 %v163
    %v587 = vunpack.c.l.b16 %v164
    %v588 = vunpack.c.l.b16 %v165
    %v589 = vunpack.c.l.b16 %v166
    %v590 = vunpack.c.l.b16 %v167
    %v591 = vunpack.c.l.b16 %v168
    %v592 = vunpack.c.l.b16 %v169
    %v593 = vunpack.c.l.b16 %v170
    %v594 = vunpack.c.l.b16 %v171
    %v595 = vunpack.c.l.b16 %v172
    %v596 = vunpack.c.l.b16 %v173
    %v597 = vunpack.c.l.b16 %v174
    %v598 = vunpack.c.l.b16 %v175
    %v599 = vunpack.c.l.b16 %v176
    %v600 = vunpack.c.l.b16 %v177
    %v601 = vpack.c.b16 %v490, %v489
    %v602 = vpack.c.b16 %v492, %v491
    %v603 = vpack.c.b16 %v494, %v493
    %v604 = vpack.c.b16 %v496, %v495
    %v605 = vpack.c.b16 %v498, %v497
    %v606 = vpack.c.b16 %v500, %v499
    %v607 = vpack.c.b16 %v502, %v501
    %v608 = vpack.c.b16 %v504, %v503
    %v609 = vpack.c.b16 %v506, %v505
    %v610 = vpack.c.b16 %v508, %v507
    %v611 = vpack.c.b16 %v510, %v509
    %v612 = vpack.c.b16 %v512, %v511
    %v613 = vpack.c.b16 %v514, %v513
    %v614 = vpack.c.b16 %v516, %v515
    %v615 = vpack.c.b16 %v518, %v517
    %v616 = vpack.c.b16 %v520, %v519
    %v617 = vpack.c.b16 %v522, %v521
    %v618 = vpack.c.b16 %v524, %v523
    %v619 = vpack.c.b16 %v526, %v525
    %v620 = vpack.c.b16 %v528, %v527
    %v621 = vpack.c.b16 %v530, %v529
    %v622 = vpack.c.b16 %v532, %v531
    %v623 = vpack.c.b16 %v534, %v533
    %v624 = vpack.c.b16 %v536, %v535
    %v625 = vpack.c.b16 %v538, %v537
    %v626 = vpack.c.b16 %v540, %v539
    %v627 = vpack.c.b16 %v542, %v541
    %v628 = vpack.c.b16 %v544, %v543
    %v629 = vpack.c.b16 %v546, %v545
    %v630 = vpack.c.b16 %v548, %v547
    %v631 = vpack.c.b16 %v550, %v549
    %v632 = vpack.c.b16 %v552, %v551
    %v633 = vpack.c.b16 %v554, %v553
    %v634 = vpack.c.b16 %v556, %v555
    %v635 = vpack.c.b16 %v558, %v557
    %v636 = vpack.c.b16 %v560, %v559
    %v637 = vpack.c.b16 %v562, %v561
    %v638 = vpack.c.b16 %v564, %v563
    %v639 = vpack.c.b16 %v566, %v565
    %v640 = vpack.c.b16 %v568, %v567
    %v641 = vpack.c.b16 %v570, %v569
    %v642 = vpack.c.b16 %v572, %v571
    %v643 = vpack.c.b16 %v574, %v573
    %v644 = vpack.c.b16 %v576, %v575
    %v645 = vpack.c.b16 %v578, %v577
    %v646 = vpack.c.b16 %v580, %v579
    %v647 = vpack.c.b16 %v582, %v581
    %v648 = vpack.c.b16 %v584, %v583
    %v649 = vpack.c.b16 %v586, %v585
    %v650 = vpack.c.b16 %v588, %v587
    %v651 = vpack.c.b16 %v590, %v589
    %v652 = vpack.c.b16 %v592, %v591
    %v653 = vpack.c.b16 %v594, %v593
    %v654 = vpack.c.b16 %v596, %v595
    %v655 = vpack.c.b16 %v598, %v597
    %v656 = vpack.c.b16 %v600, %v599
    %713 = vmatprep.subr.bf16.mxu0 0
    %714 = vmatpush1.bf16.msra.mxu0 %v601
    %715 = vmatprep.subr.bf16.mxu0 0
    %716 = vmatpush1.bf16.msra.mxu0 %v602
    %717 = vmatprep.subr.bf16.mxu0 0
    %718 = vmatpush1.bf16.msra.mxu0 %v603
    %719 = vmatprep.subr.bf16.mxu0 0
    %720 = vmatpush1.bf16.msra.mxu0 %v604
    %721 = vmatprep.subr.bf16.mxu0 0
    %722 = vmatpush1.bf16.msra.mxu0 %v605
    %723 = vmatprep.subr.bf16.mxu0 0
    %724 = vmatpush1.bf16.msra.mxu0 %v606
    %725 = vmatprep.subr.bf16.mxu0 0
    %726 = vmatpush1.bf16.msra.mxu0 %v607
    %727 = vmatprep.subr.bf16.mxu0 0
    %728 = vmatpush1.bf16.msra.mxu0 %v608
    %729 = vmatprep.subr.bf16.mxu0 0
    %730 = vmatpush1.bf16.msra.mxu0 %v609
    %731 = vmatprep.subr.bf16.mxu0 0
    %732 = vmatpush1.bf16.msra.mxu0 %v610
    %733 = vmatprep.subr.bf16.mxu0 0
    %734 = vmatpush1.bf16.msra.mxu0 %v611
    %735 = vmatprep.subr.bf16.mxu0 0
    %736 = vmatpush1.bf16.msra.mxu0 %v612
    %737 = vmatprep.subr.bf16.mxu0 0
    %738 = vmatpush1.bf16.msra.mxu0 %v613
    %739 = vmatprep.subr.bf16.mxu0 0
    %740 = vmatpush1.bf16.msra.mxu0 %v614
    %741 = vmatprep.subr.bf16.mxu0 0
    %742 = vmatpush1.bf16.msra.mxu0 %v615
    %743 = vmatprep.subr.bf16.mxu0 0
    %744 = vmatpush1.bf16.msra.mxu0 %v616
    %745 = vmatprep.mubr.bf16.mxu0 %v359
    %746 = vmatmul.mubr.bf16.gmra.mrb[0].mxu0 %v345
    %v747 = vpop.f32.mrb[0].mxu0
    %v748 = vadd.f32 0.0, %v747
    %v749 = vpop.f32.mrb[0].mxu0
    %v750 = vpop.f32.mrb[0].mxu0
    %v751 = vpop.f32.mrb[0].mxu0
    %752 = vdwg.mxu0
    %753 = vmatprep.subr.bf16.mxu0 0
    %754 = vmatpush1.bf16.msra.mxu0 %v617
    %755 = vmatprep.subr.bf16.mxu0 0
    %756 = vmatpush1.bf16.msra.mxu0 %v618
    %757 = vmatprep.subr.bf16.mxu0 0
    %758 = vmatpush1.bf16.msra.mxu0 %v619
    %759 = vmatprep.subr.bf16.mxu0 0
    %760 = vmatpush1.bf16.msra.mxu0 %v620
    %761 = vmatprep.subr.bf16.mxu0 0
    %762 = vmatpush1.bf16.msra.mxu0 %v621
    %763 = vmatprep.subr.bf16.mxu0 0
    %764 = vmatpush1.bf16.msra.mxu0 %v622
    %765 = vmatprep.subr.bf16.mxu0 0
    %766 = vmatpush1.bf16.msra.mxu0 %v623
    %767 = vmatprep.subr.bf16.mxu0 0
    %768 = vmatpush1.bf16.msra.mxu0 %v624
    %769 = vmatprep.subr.bf16.mxu0 0
    %770 = vmatpush1.bf16.msra.mxu0 %v625
    %771 = vmatprep.subr.bf16.mxu0 0
    %772 = vmatpush1.bf16.msra.mxu0 %v626
    %773 = vmatprep.subr.bf16.mxu0 0
    %774 = vmatpush1.bf16.msra.mxu0 %v627
    %775 = vmatprep.subr.bf16.mxu0 0
    %776 = vmatpush1.bf16.msra.mxu0 %v628
    %777 = vmatprep.subr.bf16.mxu0 0
    %778 = vmatpush1.bf16.msra.mxu0 %v629
    %779 = vmatprep.subr.bf16.mxu0 0
    %780 = vmatpush1.bf16.msra.mxu0 %v630
    %781 = vmatprep.subr.bf16.mxu0 0
    %782 = vmatpush1.bf16.msra.mxu0 %v631
    %783 = vmatprep.subr.bf16.mxu0 0
    %784 = vmatpush1.bf16.msra.mxu0 %v632
    %785 = vmatprep.mubr.bf16.mxu0 %v369
    %786 = vmatmul.mubr.bf16.gmra.mrb[0].mxu0 %v367
    %v787 = vpop.f32.mrb[0].mxu0
    %v788 = vadd.f32 %v748, %v787
    %v789 = vpop.f32.mrb[0].mxu0
    %v790 = vpop.f32.mrb[0].mxu0
    %v791 = vpop.f32.mrb[0].mxu0
    %792 = vdwg.mxu0
    %793 = vmatprep.subr.bf16.mxu0 0
    %794 = vmatpush1.bf16.msra.mxu0 %v633
    %795 = vmatprep.subr.bf16.mxu0 0
    %796 = vmatpush1.bf16.msra.mxu0 %v634
    %797 = vmatprep.subr.bf16.mxu0 0
    %798 = vmatpush1.bf16.msra.mxu0 %v635
    %799 = vmatprep.subr.bf16.mxu0 0
    %800 = vmatpush1.bf16.msra.mxu0 %v636
    %801 = vmatprep.subr.bf16.mxu0 0
    %802 = vmatpush1.bf16.msra.mxu0 %v637
    %803 = vmatprep.subr.bf16.mxu0 0
    %804 = vmatpush1.bf16.msra.mxu0 %v638
    %805 = vmatprep.subr.bf16.mxu0 0
    %806 = vmatpush1.bf16.msra.mxu0 %v639
    %807 = vmatprep.subr.bf16.mxu0 0
    %808 = vmatpush1.bf16.msra.mxu0 %v640
    %809 = vmatprep.subr.bf16.mxu0 0
    %810 = vmatpush1.bf16.msra.mxu0 %v641
    %811 = vmatprep.subr.bf16.mxu0 0
    %812 = vmatpush1.bf16.msra.mxu0 %v642
    %813 = vmatprep.subr.bf16.mxu0 0
    %814 = vmatpush1.bf16.msra.mxu0 %v643
    %815 = vmatprep.subr.bf16.mxu0 0
    %816 = vmatpush1.bf16.msra.mxu0 %v644
    %817 = vmatprep.subr.bf16.mxu0 0
    %818 = vmatpush1.bf16.msra.mxu0 %v645
    %819 = vmatprep.subr.bf16.mxu0 0
    %820 = vmatpush1.bf16.msra.mxu0 %v646
    %821 = vmatprep.subr.bf16.mxu0 0
    %822 = vmatpush1.bf16.msra.mxu0 %v647
    %823 = vmatprep.subr.bf16.mxu0 0
    %824 = vmatpush1.bf16.msra.mxu0 %v648
    %825 = vmatprep.mubr.bf16.mxu0 %v366
    %826 = vmatmul.mubr.bf16.gmra.mrb[0].mxu0 %v352
    %v827 = vpop.f32.mrb[0].mxu0
    %v828 = vadd.f32 %v788, %v827
    %v829 = vpop.f32.mrb[0].mxu0
    %v830 = vpop.f32.mrb[0].mxu0
    %v831 = vpop.f32.mrb[0].mxu0
    %832 = vdwg.mxu0
    %833 = vmatprep.subr.bf16.mxu0 0
    %834 = vmatpush1.bf16.msra.mxu0 %v649
    %835 = vmatprep.subr.bf16.mxu0 0
    %836 = vmatpush1.bf16.msra.mxu0 %v650
    %837 = vmatprep.subr.bf16.mxu0 0
    %838 = vmatpush1.bf16.msra.mxu0 %v651
    %839 = vmatprep.subr.bf16.mxu0 0
    %840 = vmatpush1.bf16.msra.mxu0 %v652
    %841 = vmatprep.subr.bf16.mxu0 0
    %842 = vmatpush1.bf16.msra.mxu0 %v653
    %843 = vmatprep.subr.bf16.mxu0 0
    %844 = vmatpush1.bf16.msra.mxu0 %v654
    %845 = vmatprep.subr.bf16.mxu0 0
    %846 = vmatpush1.bf16.msra.mxu0 %v655
    %847 = vmatprep.subr.bf16.mxu0 0
    %848 = vmatpush1.bf16.msra.mxu0 %v656
    %849 = vmatprep.subr.bf16.mxu0 0
    %850 = vmatpush1.bf16.msra.mxu0 0
    %851 = vmatprep.subr.bf16.mxu0 0
    %852 = vmatpush1.bf16.msra.mxu0 0
    %853 = vmatprep.subr.bf16.mxu0 0
    %854 = vmatpush1.bf16.msra.mxu0 0
    %855 = vmatprep.subr.bf16.mxu0 0
    %856 = vmatpush1.bf16.msra.mxu0 0
    %857 = vmatprep.subr.bf16.mxu0 0
    %858 = vmatpush1.bf16.msra.mxu0 0
    %859 = vmatprep.subr.bf16.mxu0 0
    %860 = vmatpush1.bf16.msra.mxu0 0
    %861 = vmatprep.subr.bf16.mxu0 0
    %862 = vmatpush1.bf16.msra.mxu0 0
    %863 = vmatprep.subr.bf16.mxu0 0
    %864 = vmatpush1.bf16.msra.mxu0 0
    %865 = vmatprep.mubr.bf16.mxu0 0
    %866 = vmatmul.mubr.bf16.gmra.mrb[0].mxu0 %v368
    %v867 = vpop.f32.mrb[0].mxu0
    %v868 = vadd.f32 %v828, %v867
    %v869 = vpop.f32.mrb[0].mxu0
    %v870 = vpop.f32.mrb[0].mxu0
    %v871 = vpop.f32.mrb[0].mxu0
    %872 = vdwg.mxu0
    %v873 = vstv %s318
    %v874 = vmul.f32 %v873, %v868
    %v875 = vstv %s320
    %v876 = vmul.f32 %v875, %v63
    %v877 = vadd.f32 %v876, %v64
    %v878 = vlaneseq
    %v879 = vshrl.u32 %v878, 7
    %v880 = vsub.s32 0, %v879
    %v881 = vrot.slane %v877, %v880
    %v882 = vadd.f32 %v874, %v881
    %v883 = vmax.f32 %v882, 0.0
    %v884 = vld [vmem:[#allocation6] sm:$0xf]
    %v885 = vld [vmem:[#allocation6 + $0x4] sm:$0xf]
    %v886 = vld [vmem:[#allocation6 + $0x8] sm:$0xf]
    %v887 = vld [vmem:[#allocation6 + $0xc] sm:$0xf]
    %v888 = vld [vmem:[#allocation6 + $0x10] sm:$0xf]
    %v889 = vld [vmem:[#allocation6 + $0x14] sm:$0xf]
    %v890 = vld [vmem:[#allocation6 + $0x18] sm:$0xf]
    %v891 = vld [vmem:[#allocation6 + $0x1c] sm:$0xf]
    %v892 = vld [vmem:[#allocation6 + $0x20] sm:$0xf]
    %v893 = vld [vmem:[#allocation6 + $0x24] sm:$0xf]
    %v894 = vld [vmem:[#allocation6 + $0x28] sm:$0xf]
    %v895 = vld [vmem:[#allocation6 + $0x2c] sm:$0xf]
    %v896 = vld [vmem:[#allocation6 + $0x30] sm:$0xf]
    %v897 = vld [vmem:[#allocation6 + $0x34] sm:$0xf]
    %v898 = vld [vmem:[#allocation6 + $0x38] sm:$0xf]
    %v899 = vld [vmem:[#allocation6 + $0x3c] sm:$0xf]
    %v900 = vsel %vm222, %v883, 0.0
    %901 = vadd.xlane.f32.xlu0 %v900
    %v902 = vpop.xlane.xlu0 %901
    %v903 = vrot.slane %v902, 4
    %v904 = vadd.f32 %v902, %v903
    %v905 = vrot.slane %v904, 2
    %v906 = vadd.f32 %v904, %v905
    %v907 = vrot.slane %v906, 1
    %v908 = vadd.f32 %v906, %v907
    %s909 = vtos %v908
    %s910 = smul.f32 %s909, 0.0078125
    %v911 = vmul.f32 %v883, %v883
    %v912 = vsel %vm222, %v911, 0.0
    %913 = vadd.xlane.f32.xlu0 %v912
    %v914 = vpop.xlane.xlu0 %913
    %v915 = vrot.slane %v914, 4
    %v916 = vadd.f32 %v914, %v915
    %v917 = vrot.slane %v916, 2
    %v918 = vadd.f32 %v916, %v917
    %v919 = vrot.slane %v918, 1
    %v920 = vadd.f32 %v918, %v919
    %s921 = vtos %v920
    %s922 = smul.f32 %s921, 0.0078125
    %v923 = vstv %s922
    %v924 = vrsqrt.pop %v923
    %s925 = vtos %v924
    %s926 = sld [smem:[#allocation8 + $0x2]]
    %s927 = sld [smem:[#allocation8 + $0x3]]
    %s928 = smul.f32 %s926, %s925
    %s929 = smul.f32 %s910, %s928
    %s930 = ssub.f32 %s927, %s929
    %v931 = vpack.c.bf16 %v883, %v883
    %v948 = vunpack.c.l.b16 %v884
    %v949 = vunpack.c.l.b16 %v885
    %v950 = vunpack.c.l.b16 %v886
    %v951 = vunpack.c.l.b16 %v887
    %v952 = vunpack.c.l.b16 %v888
    %v953 = vunpack.c.l.b16 %v889
    %v954 = vunpack.c.l.b16 %v890
    %v955 = vunpack.c.l.b16 %v891
    %v956 = vunpack.c.l.b16 %v892
    %v957 = vunpack.c.l.b16 %v893
    %v958 = vunpack.c.l.b16 %v894
    %v959 = vunpack.c.l.b16 %v895
    %v960 = vunpack.c.l.b16 %v896
    %v961 = vunpack.c.l.b16 %v897
    %v962 = vunpack.c.l.b16 %v898
    %v963 = vunpack.c.l.b16 %v899
    %v964 = vpack.c.b16 %v949, %v948
    %v965 = vpack.c.b16 %v951, %v950
    %v966 = vpack.c.b16 %v953, %v952
    %v967 = vpack.c.b16 %v955, %v954
    %v968 = vpack.c.b16 %v957, %v956
    %v969 = vpack.c.b16 %v959, %v958
    %v970 = vpack.c.b16 %v961, %v960
    %v971 = vpack.c.b16 %v963, %v962
    %980 = vmatprep.subr.bf16.mxu0 0
    %981 = vmatpush1.bf16.msra.mxu0 %v964
    %982 = vmatprep.subr.bf16.mxu0 0
    %983 = vmatpush1.bf16.msra.mxu0 %v965
    %984 = vmatprep.subr.bf16.mxu0 0
    %985 = vmatpush1.bf16.msra.mxu0 %v966
    %986 = vmatprep.subr.bf16.mxu0 0
    %987 = vmatpush1.bf16.msra.mxu0 %v967
    %988 = vmatprep.subr.bf16.mxu0 0
    %989 = vmatpush1.bf16.msra.mxu0 %v968
    %990 = vmatprep.subr.bf16.mxu0 0
    %991 = vmatpush1.bf16.msra.mxu0 %v969
    %992 = vmatprep.subr.bf16.mxu0 0
    %993 = vmatpush1.bf16.msra.mxu0 %v970
    %994 = vmatprep.subr.bf16.mxu0 0
    %995 = vmatpush1.bf16.msra.mxu0 %v971
    %996 = vmatprep.subr.bf16.mxu0 0
    %997 = vmatpush1.bf16.msra.mxu0 0
    %998 = vmatprep.subr.bf16.mxu0 0
    %999 = vmatpush1.bf16.msra.mxu0 0
    %1000 = vmatprep.subr.bf16.mxu0 0
    %1001 = vmatpush1.bf16.msra.mxu0 0
    %1002 = vmatprep.subr.bf16.mxu0 0
    %1003 = vmatpush1.bf16.msra.mxu0 0
    %1004 = vmatprep.subr.bf16.mxu0 0
    %1005 = vmatpush1.bf16.msra.mxu0 0
    %1006 = vmatprep.subr.bf16.mxu0 0
    %1007 = vmatpush1.bf16.msra.mxu0 0
    %1008 = vmatprep.subr.bf16.mxu0 0
    %1009 = vmatpush1.bf16.msra.mxu0 0
    %1010 = vmatprep.subr.bf16.mxu0 0
    %1011 = vmatpush1.bf16.msra.mxu0 0
    %1012 = vmatprep.mubr.bf16.mxu0 0
    %1013 = vmatmul.mubr.bf16.gmra.mrb[0].mxu0 %v931
    %v1014 = vpop.f32.mrb[0].mxu0
    %v1015 = vadd.f32 0.0, %v1014
    %v1016 = vpop.f32.mrb[0].mxu0
    %v1017 = vpop.f32.mrb[0].mxu0
    %v1018 = vpop.f32.mrb[0].mxu0
    %1019 = vdwg.mxu0
    %v1020 = vstv %s928
    %v1021 = vmul.f32 %v1020, %v1015
    %v1022 = vstv %s930
    %v1023 = vmul.f32 %v1022, %v63
    %v1024 = vadd.f32 %v1023, %v64
    %v1025 = vlaneseq
    %v1026 = vshrl.u32 %v1025, 7
    %v1027 = vsub.s32 1, %v1026
    %v1028 = vrot.slane %v1024, %v1027
    %v1029 = vadd.f32 %v1021, %v1028
    %v1030 = vmax.f32 %v1029, 0.0
    %s1031 = scalar_lea.vmem [#allocation6], 64
    %v1032 = vld [vmem:[%s1031] sm:$0xf]
    %v1033 = vld [vmem:[%s1031 + $0x4] sm:$0xf]
    %v1034 = vld [vmem:[%s1031 + $0x8] sm:$0xf]
    %v1035 = vld [vmem:[%s1031 + $0xc] sm:$0xf]
    %v1036 = vld [vmem:[%s1031 + $0x10] sm:$0xf]
    %v1037 = vld [vmem:[%s1031 + $0x14] sm:$0xf]
    %v1038 = vld [vmem:[%s1031 + $0x18] sm:$0xf]
    %v1039 = vld [vmem:[%s1031 + $0x1c] sm:$0xf]
    %v1040 = vld [vmem:[%s1031 + $0x20] sm:$0xf]
    %v1041 = vld [vmem:[%s1031 + $0x24] sm:$0xf]
    %v1042 = vld [vmem:[%s1031 + $0x28] sm:$0xf]
    %v1043 = vld [vmem:[%s1031 + $0x2c] sm:$0xf]
    %v1044 = vld [vmem:[%s1031 + $0x30] sm:$0xf]
    %v1045 = vld [vmem:[%s1031 + $0x34] sm:$0xf]
    %v1046 = vld [vmem:[%s1031 + $0x38] sm:$0xf]
    %v1047 = vld [vmem:[%s1031 + $0x3c] sm:$0xf]
    %v1048 = vsel %vm222, %v1030, 0.0
    %1049 = vadd.xlane.f32.xlu0 %v1048
    %v1050 = vpop.xlane.xlu0 %1049
    %v1051 = vrot.slane %v1050, 4
    %v1052 = vadd.f32 %v1050, %v1051
    %v1053 = vrot.slane %v1052, 2
    %v1054 = vadd.f32 %v1052, %v1053
    %v1055 = vrot.slane %v1054, 1
    %v1056 = vadd.f32 %v1054, %v1055
    %s1057 = vtos %v1056
    %s1058 = smul.f32 %s1057, 0.0078125
    %v1059 = vmul.f32 %v1030, %v1030
    %v1060 = vsel %vm222, %v1059, 0.0
    %1061 = vadd.xlane.f32.xlu0 %v1060
    %v1062 = vpop.xlane.xlu0 %1061
    %v1063 = vrot.slane %v1062, 4
    %v1064 = vadd.f32 %v1062, %v1063
    %v1065 = vrot.slane %v1064, 2
    %v1066 = vadd.f32 %v1064, %v1065
    %v1067 = vrot.slane %v1066, 1
    %v1068 = vadd.f32 %v1066, %v1067
    %s1069 = vtos %v1068
    %s1070 = smul.f32 %s1069, 0.0078125
    %v1071 = vstv %s1070
    %v1072 = vrsqrt.pop %v1071
    %s1073 = vtos %v1072
    %s1074 = sld [smem:[#allocation8 + $0x4]]
    %s1075 = sld [smem:[#allocation8 + $0x5]]
    %s1076 = smul.f32 %s1074, %s1073
    %s1077 = smul.f32 %s1058, %s1076
    %s1078 = ssub.f32 %s1075, %s1077
    %v1079 = vpack.c.bf16 %v1030, %v1030
    %v1096 = vunpack.c.l.b16 %v1032
    %v1097 = vunpack.c.l.b16 %v1033
    %v1098 = vunpack.c.l.b16 %v1034
    %v1099 = vunpack.c.l.b16 %v1035
    %v1100 = vunpack.c.l.b16 %v1036
    %v1101 = vunpack.c.l.b16 %v1037
    %v1102 = vunpack.c.l.b16 %v1038
    %v1103 = vunpack.c.l.b16 %v1039
    %v1104 = vunpack.c.l.b16 %v1040
    %v1105 = vunpack.c.l.b16 %v1041
    %v1106 = vunpack.c.l.b16 %v1042
    %v1107 = vunpack.c.l.b16 %v1043
    %v1108 = vunpack.c.l.b16 %v1044
    %v1109 = vunpack.c.l.b16 %v1045
    %v1110 = vunpack.c.l.b16 %v1046
    %v1111 = vunpack.c.l.b16 %v1047
    %v1112 = vpack.c.b16 %v1097, %v1096
    %v1113 = vpack.c.b16 %v1099, %v1098
    %v1114 = vpack.c.b16 %v1101, %v1100
    %v1115 = vpack.c.b16 %v1103, %v1102
    %v1116 = vpack.c.b16 %v1105, %v1104
    %v1117 = vpack.c.b16 %v1107, %v1106
    %v1118 = vpack.c.b16 %v1109, %v1108
    %v1119 = vpack.c.b16 %v1111, %v1110
    %1128 = vmatprep.subr.bf16.mxu0 0
    %1129 = vmatpush1.bf16.msra.mxu0 %v1112
    %1130 = vmatprep.subr.bf16.mxu0 0
    %1131 = vmatpush1.bf16.msra.mxu0 %v1113
    %1132 = vmatprep.subr.bf16.mxu0 0
    %1133 = vmatpush1.bf16.msra.mxu0 %v1114
    %1134 = vmatprep.subr.bf16.mxu0 0
    %1135 = vmatpush1.bf16.msra.mxu0 %v1115
    %1136 = vmatprep.subr.bf16.mxu0 0
    %1137 = vmatpush1.bf16.msra.mxu0 %v1116
    %1138 = vmatprep.subr.bf16.mxu0 0
    %1139 = vmatpush1.bf16.msra.mxu0 %v1117
    %1140 = vmatprep.subr.bf16.mxu0 0
    %1141 = vmatpush1.bf16.msra.mxu0 %v1118
    %1142 = vmatprep.subr.bf16.mxu0 0
    %1143 = vmatpush1.bf16.msra.mxu0 %v1119
    %1144 = vmatprep.subr.bf16.mxu0 0
    %1145 = vmatpush1.bf16.msra.mxu0 0
    %1146 = vmatprep.subr.bf16.mxu0 0
    %1147 = vmatpush1.bf16.msra.mxu0 0
    %1148 = vmatprep.subr.bf16.mxu0 0
    %1149 = vmatpush1.bf16.msra.mxu0 0
    %1150 = vmatprep.subr.bf16.mxu0 0
    %1151 = vmatpush1.bf16.msra.mxu0 0
    %1152 = vmatprep.subr.bf16.mxu0 0
    %1153 = vmatpush1.bf16.msra.mxu0 0
    %1154 = vmatprep.subr.bf16.mxu0 0
    %1155 = vmatpush1.bf16.msra.mxu0 0
    %1156 = vmatprep.subr.bf16.mxu0 0
    %1157 = vmatpush1.bf16.msra.mxu0 0
    %1158 = vmatprep.subr.bf16.mxu0 0
    %1159 = vmatpush1.bf16.msra.mxu0 0
    %1160 = vmatprep.mubr.bf16.mxu0 0
    %1161 = vmatmul.mubr.bf16.gmra.mrb[0].mxu0 %v1079
    %v1162 = vpop.f32.mrb[0].mxu0
    %v1163 = vadd.f32 0.0, %v1162
    %v1164 = vpop.f32.mrb[0].mxu0
    %v1165 = vpop.f32.mrb[0].mxu0
    %v1166 = vpop.f32.mrb[0].mxu0
    %1167 = vdwg.mxu0
    %v1168 = vstv %s1076
    %v1169 = vmul.f32 %v1168, %v1163
    %v1170 = vstv %s1078
    %v1171 = vmul.f32 %v1170, %v63
    %v1172 = vadd.f32 %v1171, %v64
    %v1173 = vlaneseq
    %v1174 = vshrl.u32 %v1173, 7
    %v1175 = vsub.s32 2, %v1174
    %v1176 = vrot.slane %v1172, %v1175
    %v1177 = vadd.f32 %v1169, %v1176
    %v1178 = vmax.f32 %v1177, 0.0
    %s1179 = scalar_lea.vmem [#allocation6], 128
    %v1180 = vld [vmem:[%s1179] sm:$0xf]
    %v1181 = vld [vmem:[%s1179 + $0x4] sm:$0xf]
    %v1182 = vld [vmem:[%s1179 + $0x8] sm:$0xf]
    %v1183 = vld [vmem:[%s1179 + $0xc] sm:$0xf]
    %v1184 = vld [vmem:[%s1179 + $0x10] sm:$0xf]
    %v1185 = vld [vmem:[%s1179 + $0x14] sm:$0xf]
    %v1186 = vld [vmem:[%s1179 + $0x18] sm:$0xf]
    %v1187 = vld [vmem:[%s1179 + $0x1c] sm:$0xf]
    %v1188 = vld [vmem:[%s1179 + $0x20] sm:$0xf]
    %v1189 = vld [vmem:[%s1179 + $0x24] sm:$0xf]
    %v1190 = vld [vmem:[%s1179 + $0x28] sm:$0xf]
    %v1191 = vld [vmem:[%s1179 + $0x2c] sm:$0xf]
    %v1192 = vld [vmem:[%s1179 + $0x30] sm:$0xf]
    %v1193 = vld [vmem:[%s1179 + $0x34] sm:$0xf]
    %v1194 = vld [vmem:[%s1179 + $0x38] sm:$0xf]
    %v1195 = vld [vmem:[%s1179 + $0x3c] sm:$0xf]
    %v1196 = vsel %vm222, %v1178, 0.0
    %1197 = vadd.xlane.f32.xlu0 %v1196
    %v1198 = vpop.xlane.xlu0 %1197
    %v1199 = vrot.slane %v1198, 4
    %v1200 = vadd.f32 %v1198, %v1199
    %v1201 = vrot.slane %v1200, 2
    %v1202 = vadd.f32 %v1200, %v1201
    %v1203 = vrot.slane %v1202, 1
    %v1204 = vadd.f32 %v1202, %v1203
    %s1205 = vtos %v1204
    %s1206 = smul.f32 %s1205, 0.0078125
    %v1207 = vmul.f32 %v1178, %v1178
    %v1208 = vsel %vm222, %v1207, 0.0
    %1209 = vadd.xlane.f32.xlu0 %v1208
    %v1210 = vpop.xlane.xlu0 %1209
    %v1211 = vrot.slane %v1210, 4
    %v1212 = vadd.f32 %v1210, %v1211
    %v1213 = vrot.slane %v1212, 2
    %v1214 = vadd.f32 %v1212, %v1213
    %v1215 = vrot.slane %v1214, 1
    %v1216 = vadd.f32 %v1214, %v1215
    %s1217 = vtos %v1216
    %s1218 = smul.f32 %s1217, 0.0078125
    %v1219 = vstv %s1218
    %v1220 = vrsqrt.pop %v1219
    %s1221 = vtos %v1220
    %s1222 = sld [smem:[#allocation8 + $0x6]]
    %s1223 = sld [smem:[#allocation8 + $0x7]]
    %s1224 = smul.f32 %s1222, %s1221
    %s1225 = smul.f32 %s1206, %s1224
    %s1226 = ssub.f32 %s1223, %s1225
    %v1227 = vpack.c.bf16 %v1178, %v1178
    %v1244 = vunpack.c.l.b16 %v1180
    %v1245 = vunpack.c.l.b16 %v1181
    %v1246 = vunpack.c.l.b16 %v1182
    %v1247 = vunpack.c.l.b16 %v1183
    %v1248 = vunpack.c.l.b16 %v1184
    %v1249 = vunpack.c.l.b16 %v1185
    %v1250 = vunpack.c.l.b16 %v1186
    %v1251 = vunpack.c.l.b16 %v1187
    %v1252 = vunpack.c.l.b16 %v1188
    %v1253 = vunpack.c.l.b16 %v1189
    %v1254 = vunpack.c.l.b16 %v1190
    %v1255 = vunpack.c.l.b16 %v1191
    %v1256 = vunpack.c.l.b16 %v1192
    %v1257 = vunpack.c.l.b16 %v1193
    %v1258 = vunpack.c.l.b16 %v1194
    %v1259 = vunpack.c.l.b16 %v1195
    %v1260 = vpack.c.b16 %v1245, %v1244
    %v1261 = vpack.c.b16 %v1247, %v1246
    %v1262 = vpack.c.b16 %v1249, %v1248
    %v1263 = vpack.c.b16 %v1251, %v1250
    %v1264 = vpack.c.b16 %v1253, %v1252
    %v1265 = vpack.c.b16 %v1255, %v1254
    %v1266 = vpack.c.b16 %v1257, %v1256
    %v1267 = vpack.c.b16 %v1259, %v1258
    %1276 = vmatprep.subr.bf16.mxu0 0
    %1277 = vmatpush1.bf16.msra.mxu0 %v1260
    %1278 = vmatprep.subr.bf16.mxu0 0
    %1279 = vmatpush1.bf16.msra.mxu0 %v1261
    %1280 = vmatprep.subr.bf16.mxu0 0
    %1281 = vmatpush1.bf16.msra.mxu0 %v1262
    %1282 = vmatprep.subr.bf16.mxu0 0
    %1283 = vmatpush1.bf16.msra.mxu0 %v1263
    %1284 = vmatprep.subr.bf16.mxu0 0
    %1285 = vmatpush1.bf16.msra.mxu0 %v1264
    %1286 = vmatprep.subr.bf16.mxu0 0
    %1287 = vmatpush1.bf16.msra.mxu0 %v1265
    %1288 = vmatprep.subr.bf16.mxu0 0
    %1289 = vmatpush1.bf16.msra.mxu0 %v1266
    %1290 = vmatprep.subr.bf16.mxu0 0
    %1291 = vmatpush1.bf16.msra.mxu0 %v1267
    %1292 = vmatprep.subr.bf16.mxu0 0
    %1293 = vmatpush1.bf16.msra.mxu0 0
    %1294 = vmatprep.subr.bf16.mxu0 0
    %1295 = vmatpush1.bf16.msra.mxu0 0
    %1296 = vmatprep.subr.bf16.mxu0 0
    %1297 = vmatpush1.bf16.msra.mxu0 0
    %1298 = vmatprep.subr.bf16.mxu0 0
    %1299 = vmatpush1.bf16.msra.mxu0 0
    %1300 = vmatprep.subr.bf16.mxu0 0
    %1301 = vmatpush1.bf16.msra.mxu0 0
    %1302 = vmatprep.subr.bf16.mxu0 0
    %1303 = vmatpush1.bf16.msra.mxu0 0
    %1304 = vmatprep.subr.bf16.mxu0 0
    %1305 = vmatpush1.bf16.msra.mxu0 0
    %1306 = vmatprep.subr.bf16.mxu0 0
    %1307 = vmatpush1.bf16.msra.mxu0 0
    %1308 = vmatprep.mubr.bf16.mxu0 0
    %1309 = vmatmul.mubr.bf16.gmra.mrb[0].mxu0 %v1227
    %v1310 = vpop.f32.mrb[0].mxu0
    %v1311 = vadd.f32 0.0, %v1310
    %v1312 = vpop.f32.mrb[0].mxu0
    %v1313 = vpop.f32.mrb[0].mxu0
    %v1314 = vpop.f32.mrb[0].mxu0
    %1315 = vdwg.mxu0
    %v1316 = vstv %s1224
    %v1317 = vmul.f32 %v1316, %v1311
    %v1318 = vstv %s1226
    %v1319 = vmul.f32 %v1318, %v63
    %v1320 = vadd.f32 %v1319, %v64
    %v1321 = vlaneseq
    %v1322 = vshrl.u32 %v1321, 7
    %v1323 = vsub.s32 3, %v1322
    %v1324 = vrot.slane %v1320, %v1323
    %v1325 = vadd.f32 %v1317, %v1324
    %v1326 = vmax.f32 %v1325, 0.0
    %s1327 = scalar_lea.vmem [#allocation6], 192
    %v1328 = vld [vmem:[%s1327] sm:$0xf]
    %v1329 = vld [vmem:[%s1327 + $0x4] sm:$0xf]
    %v1330 = vld [vmem:[%s1327 + $0x8] sm:$0xf]
    %v1331 = vld [vmem:[%s1327 + $0xc] sm:$0xf]
    %v1332 = vld [vmem:[%s1327 + $0x10] sm:$0xf]
    %v1333 = vld [vmem:[%s1327 + $0x14] sm:$0xf]
    %v1334 = vld [vmem:[%s1327 + $0x18] sm:$0xf]
    %v1335 = vld [vmem:[%s1327 + $0x1c] sm:$0xf]
    %v1336 = vld [vmem:[%s1327 + $0x20] sm:$0xf]
    %v1337 = vld [vmem:[%s1327 + $0x24] sm:$0xf]
    %v1338 = vld [vmem:[%s1327 + $0x28] sm:$0xf]
    %v1339 = vld [vmem:[%s1327 + $0x2c] sm:$0xf]
    %v1340 = vld [vmem:[%s1327 + $0x30] sm:$0xf]
    %v1341 = vld [vmem:[%s1327 + $0x34] sm:$0xf]
    %v1342 = vld [vmem:[%s1327 + $0x38] sm:$0xf]
    %v1343 = vld [vmem:[%s1327 + $0x3c] sm:$0xf]
    %v1344 = vsel %vm222, %v1326, 0.0
    %1345 = vadd.xlane.f32.xlu0 %v1344
    %v1346 = vpop.xlane.xlu0 %1345
    %v1347 = vrot.slane %v1346, 4
    %v1348 = vadd.f32 %v1346, %v1347
    %v1349 = vrot.slane %v1348, 2
    %v1350 = vadd.f32 %v1348, %v1349
    %v1351 = vrot.slane %v1350, 1
    %v1352 = vadd.f32 %v1350, %v1351
    %s1353 = vtos %v1352
    %s1354 = smul.f32 %s1353, 0.0078125
    %v1355 = vmul.f32 %v1326, %v1326
    %v1356 = vsel %vm222, %v1355, 0.0
    %1357 = vadd.xlane.f32.xlu0 %v1356
    %v1358 = vpop.xlane.xlu0 %1357
    %v1359 = vrot.slane %v1358, 4
    %v1360 = vadd.f32 %v1358, %v1359
    %v1361 = vrot.slane %v1360, 2
    %v1362 = vadd.f32 %v1360, %v1361
    %v1363 = vrot.slane %v1362, 1
    %v1364 = vadd.f32 %v1362, %v1363
    %s1365 = vtos %v1364
    %s1366 = smul.f32 %s1365, 0.0078125
    %v1367 = vstv %s1366
    %v1368 = vrsqrt.pop %v1367
    %s1369 = vtos %v1368
    %s1370 = sld [smem:[#allocation8 + $0x8]]
    %s1371 = sld [smem:[#allocation8 + $0x9]]
    %s1372 = smul.f32 %s1370, %s1369
    %s1373 = smul.f32 %s1354, %s1372
    %s1374 = ssub.f32 %s1371, %s1373
    %v1375 = vpack.c.bf16 %v1326, %v1326
    %v1392 = vunpack.c.l.b16 %v1328
    %v1393 = vunpack.c.l.b16 %v1329
    %v1394 = vunpack.c.l.b16 %v1330
    %v1395 = vunpack.c.l.b16 %v1331
    %v1396 = vunpack.c.l.b16 %v1332
    %v1397 = vunpack.c.l.b16 %v1333
    %v1398 = vunpack.c.l.b16 %v1334
    %v1399 = vunpack.c.l.b16 %v1335
    %v1400 = vunpack.c.l.b16 %v1336
    %v1401 = vunpack.c.l.b16 %v1337
    %v1402 = vunpack.c.l.b16 %v1338
    %v1403 = vunpack.c.l.b16 %v1339
    %v1404 = vunpack.c.l.b16 %v1340
    %v1405 = vunpack.c.l.b16 %v1341
    %v1406 = vunpack.c.l.b16 %v1342
    %v1407 = vunpack.c.l.b16 %v1343
    %v1408 = vpack.c.b16 %v1393, %v1392
    %v1409 = vpack.c.b16 %v1395, %v1394
    %v1410 = vpack.c.b16 %v1397, %v1396
    %v1411 = vpack.c.b16 %v1399, %v1398
    %v1412 = vpack.c.b16 %v1401, %v1400
    %v1413 = vpack.c.b16 %v1403, %v1402
    %v1414 = vpack.c.b16 %v1405, %v1404
    %v1415 = vpack.c.b16 %v1407, %v1406
    %1424 = vmatprep.subr.bf16.mxu0 0
    %1425 = vmatpush1.bf16.msra.mxu0 %v1408
    %1426 = vmatprep.subr.bf16.mxu0 0
    %1427 = vmatpush1.bf16.msra.mxu0 %v1409
    %1428 = vmatprep.subr.bf16.mxu0 0
    %1429 = vmatpush1.bf16.msra.mxu0 %v1410
    %1430 = vmatprep.subr.bf16.mxu0 0
    %1431 = vmatpush1.bf16.msra.mxu0 %v1411
    %1432 = vmatprep.subr.bf16.mxu0 0
    %1433 = vmatpush1.bf16.msra.mxu0 %v1412
    %1434 = vmatprep.subr.bf16.mxu0 0
    %1435 = vmatpush1.bf16.msra.mxu0 %v1413
    %1436 = vmatprep.subr.bf16.mxu0 0
    %1437 = vmatpush1.bf16.msra.mxu0 %v1414
    %1438 = vmatprep.subr.bf16.mxu0 0
    %1439 = vmatpush1.bf16.msra.mxu0 %v1415
    %1440 = vmatprep.subr.bf16.mxu0 0
    %1441 = vmatpush1.bf16.msra.mxu0 0
    %1442 = vmatprep.subr.bf16.mxu0 0
    %1443 = vmatpush1.bf16.msra.mxu0 0
    %1444 = vmatprep.subr.bf16.mxu0 0
    %1445 = vmatpush1.bf16.msra.mxu0 0
    %1446 = vmatprep.subr.bf16.mxu0 0
    %1447 = vmatpush1.bf16.msra.mxu0 0
    %1448 = vmatprep.subr.bf16.mxu0 0
    %1449 = vmatpush1.bf16.msra.mxu0 0
    %1450 = vmatprep.subr.bf16.mxu0 0
    %1451 = vmatpush1.bf16.msra.mxu0 0
    %1452 = vmatprep.subr.bf16.mxu0 0
    %1453 = vmatpush1.bf16.msra.mxu0 0
    %1454 = vmatprep.subr.bf16.mxu0 0
    %1455 = vmatpush1.bf16.msra.mxu0 0
    %1456 = vmatprep.mubr.bf16.mxu0 0
    %1457 = vmatmul.mubr.bf16.gmra.mrb[0].mxu0 %v1375
    %v1458 = vpop.f32.mrb[0].mxu0
    %v1459 = vadd.f32 0.0, %v1458
    %v1460 = vpop.f32.mrb[0].mxu0
    %v1461 = vpop.f32.mrb[0].mxu0
    %v1462 = vpop.f32.mrb[0].mxu0
    %1463 = vdwg.mxu0
    %v1464 = vstv %s1372
    %v1465 = vmul.f32 %v1464, %v1459
    %v1466 = vstv %s1374
    %v1467 = vmul.f32 %v1466, %v63
    %v1468 = vadd.f32 %v1467, %v64
    %v1469 = vlaneseq
    %v1470 = vshrl.u32 %v1469, 7
    %v1471 = vsub.s32 4, %v1470
    %v1472 = vrot.slane %v1468, %v1471
    %v1473 = vadd.f32 %v1465, %v1472
    %v1474 = vmax.f32 %v1473, 0.0
    %s1475 = scalar_lea.vmem [#allocation6], 256
    %v1476 = vld [vmem:[%s1475] sm:$0xf]
    %v1477 = vld [vmem:[%s1475 + $0x4] sm:$0xf]
    %v1478 = vld [vmem:[%s1475 + $0x8] sm:$0xf]
    %v1479 = vld [vmem:[%s1475 + $0xc] sm:$0xf]
    %v1480 = vld [vmem:[%s1475 + $0x10] sm:$0xf]
    %v1481 = vld [vmem:[%s1475 + $0x14] sm:$0xf]
    %v1482 = vld [vmem:[%s1475 + $0x18] sm:$0xf]
    %v1483 = vld [vmem:[%s1475 + $0x1c] sm:$0xf]
    %v1484 = vld [vmem:[%s1475 + $0x20] sm:$0xf]
    %v1485 = vld [vmem:[%s1475 + $0x24] sm:$0xf]
    %v1486 = vld [vmem:[%s1475 + $0x28] sm:$0xf]
    %v1487 = vld [vmem:[%s1475 + $0x2c] sm:$0xf]
    %v1488 = vld [vmem:[%s1475 + $0x30] sm:$0xf]
    %v1489 = vld [vmem:[%s1475 + $0x34] sm:$0xf]
    %v1490 = vld [vmem:[%s1475 + $0x38] sm:$0xf]
    %v1491 = vld [vmem:[%s1475 + $0x3c] sm:$0xf]
    %v1492 = vsel %vm222, %v1474, 0.0
    %1493 = vadd.xlane.f32.xlu0 %v1492
    %v1494 = vpop.xlane.xlu0 %1493
    %v1495 = vrot.slane %v1494, 4
    %v1496 = vadd.f32 %v1494, %v1495
    %v1497 = vrot.slane %v1496, 2
    %v1498 = vadd.f32 %v1496, %v1497
    %v1499 = vrot.slane %v1498, 1
    %v1500 = vadd.f32 %v1498, %v1499
    %s1501 = vtos %v1500
    %s1502 = smul.f32 %s1501, 0.0078125
    %v1503 = vmul.f32 %v1474, %v1474
    %v1504 = vsel %vm222, %v1503, 0.0
    %1505 = vadd.xlane.f32.xlu0 %v1504
    %v1506 = vpop.xlane.xlu0 %1505
    %v1507 = vrot.slane %v1506, 4
    %v1508 = vadd.f32 %v1506, %v1507
    %v1509 = vrot.slane %v1508, 2
    %v1510 = vadd.f32 %v1508, %v1509
    %v1511 = vrot.slane %v1510, 1
    %v1512 = vadd.f32 %v1510, %v1511
    %s1513 = vtos %v1512
    %s1514 = smul.f32 %s1513, 0.0078125
    %v1515 = vstv %s1514
    %v1516 = vrsqrt.pop %v1515
    %s1517 = vtos %v1516
    %s1518 = sld [smem:[#allocation8 + $0xa]]
    %s1519 = sld [smem:[#allocation8 + $0xb]]
    %s1520 = smul.f32 %s1518, %s1517
    %s1521 = smul.f32 %s1502, %s1520
    %s1522 = ssub.f32 %s1519, %s1521
    %v1523 = vpack.c.bf16 %v1474, %v1474
    %v1540 = vunpack.c.l.b16 %v1476
    %v1541 = vunpack.c.l.b16 %v1477
    %v1542 = vunpack.c.l.b16 %v1478
    %v1543 = vunpack.c.l.b16 %v1479
    %v1544 = vunpack.c.l.b16 %v1480
    %v1545 = vunpack.c.l.b16 %v1481
    %v1546 = vunpack.c.l.b16 %v1482
    %v1547 = vunpack.c.l.b16 %v1483
    %v1548 = vunpack.c.l.b16 %v1484
    %v1549 = vunpack.c.l.b16 %v1485
    %v1550 = vunpack.c.l.b16 %v1486
    %v1551 = vunpack.c.l.b16 %v1487
    %v1552 = vunpack.c.l.b16 %v1488
    %v1553 = vunpack.c.l.b16 %v1489
    %v1554 = vunpack.c.l.b16 %v1490
    %v1555 = vunpack.c.l.b16 %v1491
    %v1556 = vpack.c.b16 %v1541, %v1540
    %v1557 = vpack.c.b16 %v1543, %v1542
    %v1558 = vpack.c.b16 %v1545, %v1544
    %v1559 = vpack.c.b16 %v1547, %v1546
    %v1560 = vpack.c.b16 %v1549, %v1548
    %v1561 = vpack.c.b16 %v1551, %v1550
    %v1562 = vpack.c.b16 %v1553, %v1552
    %v1563 = vpack.c.b16 %v1555, %v1554
    %1572 = vmatprep.subr.bf16.mxu0 0
    %1573 = vmatpush1.bf16.msra.mxu0 %v1556
    %1574 = vmatprep.subr.bf16.mxu0 0
    %1575 = vmatpush1.bf16.msra.mxu0 %v1557
    %1576 = vmatprep.subr.bf16.mxu0 0
    %1577 = vmatpush1.bf16.msra.mxu0 %v1558
    %1578 = vmatprep.subr.bf16.mxu0 0
    %1579 = vmatpush1.bf16.msra.mxu0 %v1559
    %1580 = vmatprep.subr.bf16.mxu0 0
    %1581 = vmatpush1.bf16.msra.mxu0 %v1560
    %1582 = vmatprep.subr.bf16.mxu0 0
    %1583 = vmatpush1.bf16.msra.mxu0 %v1561
    %1584 = vmatprep.subr.bf16.mxu0 0
    %1585 = vmatpush1.bf16.msra.mxu0 %v1562
    %1586 = vmatprep.subr.bf16.mxu0 0
    %1587 = vmatpush1.bf16.msra.mxu0 %v1563
    %1588 = vmatprep.subr.bf16.mxu0 0
    %1589 = vmatpush1.bf16.msra.mxu0 0
    %1590 = vmatprep.subr.bf16.mxu0 0
    %1591 = vmatpush1.bf16.msra.mxu0 0
    %1592 = vmatprep.subr.bf16.mxu0 0
    %1593 = vmatpush1.bf16.msra.mxu0 0
    %1594 = vmatprep.subr.bf16.mxu0 0
    %1595 = vmatpush1.bf16.msra.mxu0 0
    %1596 = vmatprep.subr.bf16.mxu0 0
    %1597 = vmatpush1.bf16.msra.mxu0 0
    %1598 = vmatprep.subr.bf16.mxu0 0
    %1599 = vmatpush1.bf16.msra.mxu0 0
    %1600 = vmatprep.subr.bf16.mxu0 0
    %1601 = vmatpush1.bf16.msra.mxu0 0
    %1602 = vmatprep.subr.bf16.mxu0 0
    %1603 = vmatpush1.bf16.msra.mxu0 0
    %1604 = vmatprep.mubr.bf16.mxu0 0
    %1605 = vmatmul.mubr.bf16.gmra.mrb[0].mxu0 %v1523
    %v1606 = vpop.f32.mrb[0].mxu0
    %v1607 = vadd.f32 0.0, %v1606
    %v1608 = vpop.f32.mrb[0].mxu0
    %v1609 = vpop.f32.mrb[0].mxu0
    %v1610 = vpop.f32.mrb[0].mxu0
    %1611 = vdwg.mxu0
    %v1612 = vstv %s1520
    %v1613 = vmul.f32 %v1612, %v1607
    %v1614 = vstv %s1522
    %v1615 = vmul.f32 %v1614, %v63
    %v1616 = vadd.f32 %v1615, %v64
    %v1617 = vlaneseq
    %v1618 = vshrl.u32 %v1617, 7
    %v1619 = vsub.s32 5, %v1618
    %v1620 = vrot.slane %v1616, %v1619
    %v1621 = vadd.f32 %v1613, %v1620
    %1622 = vst [vmem:[#allocation9] sm:$0x3] %v1621
    // Predicated region
    $region34: #{net_forward.1} parent=1 // pred_check
      _
    $region35: #{net_forward.1} parent=1 // pred_check_branch
      %1624 = sbr.rel (0) target = $region37
    $region36: #{net_forward.1} parent=1 // pred_region
      %s1626 = ssub.s32 32, 32
      %1627 = vsyncadd [#allocation4], %s1626
      %s1629 = sshll.u32 [#allocation9], 4
      %s1630 = int_to_ptr.vmem [resolvable:$true] %s1629
      %1632 = dma.vmem_to_hbm [thread:$0]  %s1630, 32, %s5, [#allocation4]
    $region37: #{net_forward.1} parent=1 // pred_fallthru
      _
    // Predicated region
    $region38: #{net_forward.1} parent=1 // pred_check
      _
    $region39: #{net_forward.1} parent=1 // pred_check_branch
      %1634 = sbr.rel (0) target = $region41
    $region40: #{net_forward.1} parent=1 // pred_region
      %1635 = dma.done [#allocation4], 32
    $region41: #{net_forward.1} parent=1 // pred_fallthru
      _
    %1636 = vsyncpa [#allocation3], 1
    %1637 = vsyncpa [#allocation7], 1
    %1638 = vsyncpa [#allocation4], 1
    %1639 = vsyncpa [#allocation5], 1

</llo_original>
